<compile_context>
chip_gen: v7x
topology: tpu7x:2x2x1
jax: 0.10.0
libtpu: 0.0.40
codegen_flags: <defaults>
</compile_context>

<pallas_src>
import functools

import jax
import jax.numpy as jnp
from jax.experimental import pallas as pl
from jax.experimental.pallas import tpu as pltpu

_LANE = 128


def _round_up(x, m):
    return ((x + m - 1) // m) * m


def _conv_gap_fc_kernel(x_ref, wc_ref, bc_ref, wf_ref, bf_ref, out_ref, gap_ref,
                        *, th, w, kh, kw, inv_hw):
    """One (sample, row-tile) grid step.

    x_ref:  (th + kh - 1, w + kw - 1, cin)  bf16 haloed row slab
    wc_ref: (kh*kw, cin, cout_pad)          bf16 per-tap conv weights
    bc_ref: (1, cout_pad)  f32   conv bias (zero-padded)
    wf_ref: (cout_pad, nc_pad)  f32  fc weight (zero-padded)
    bf_ref: (1, nc_pad)  f32  fc bias (zero-padded)
    out_ref: (1, nc_pad) f32  logits row for this sample
    gap_ref: (1, cout_pad) f32 scratch — running GAP sum for this sample
    """
    r = pl.program_id(1)

    # Zero the per-sample GAP accumulator at the first row tile.
    @pl.when(r == 0)
    def _init():
        gap_ref[...] = jnp.zeros_like(gap_ref)

    cin = x_ref.shape[-1]
    cout_p = wc_ref.shape[-1]

    # conv3x3 as a 9-tap accumulation of MXU matmuls over shifted windows.
    acc = jnp.zeros((th * w, cout_p), jnp.float32)
    for i in range(kh):
        for j in range(kw):
            xs = x_ref[pl.ds(i, th), pl.ds(j, w), :].reshape(th * w, cin)
            acc = acc + jnp.dot(xs, wc_ref[i * kw + j],
                                preferred_element_type=jnp.float32)

    # bias + ReLU (VPU, f32), then local partial GAP sum into scratch.
    feat = jnp.maximum(acc + bc_ref[...], 0.0)                 # (th*w, cout_p)
    gap_ref[...] += jnp.sum(feat, axis=0, keepdims=True)       # (1, cout_p)

    # Finalize on the last row tile: scale once by 1/HW, fc matmul + bias.
    @pl.when(r == pl.num_programs(1) - 1)
    def _finalize():
        gap = gap_ref[...] * inv_hw                            # (1, cout_p)
        out_ref[...] = jnp.dot(gap, wf_ref[...],
                               preferred_element_type=jnp.float32) + bf_ref[...]


def torchvision_model_forward(x_nchw, w_conv, b_conv, w_fc, b_fc, *, row_tile=None):
    """x_nchw: (N, Cin, H, W) float32.  Returns logits (N, num_classes) f32."""
    N, Cin, H, W = x_nchw.shape
    KH, KW, _, Cout = w_conv.shape
    num_classes = w_fc.shape[1]

    cout_p = _round_up(Cout, _LANE)       # lane-dense feature width
    nc_p = _round_up(num_classes, _LANE)  # lane-dense logits width

    if row_tile is None:
        row_tile = H if H <= 64 else 64
    assert H % row_tile == 0, "row_tile must divide H"
    th = row_tile
    rt = H // th
    wp = W + (KW - 1)

    # ---- layout prep (plain JAX, O(input) bytes; no 9x im2col blowup) ------
    x = jnp.transpose(x_nchw, (0, 2, 3, 1)).astype(jnp.bfloat16)      # NHWC bf16
    xp = jnp.pad(x, ((0, 0), (1, 1), (1, 1), (0, 0)))                 # SAME pad
    # Overlapping row slabs with a 1-row halo on each side (2 dup rows / tile).
    slabs = jnp.stack(
        [xp[:, r * th: r * th + th + (KH - 1)] for r in range(rt)],
        axis=1)                                      # (N, RT, th+2, Wp, Cin)

    # Zero-filled padding so extra lanes contribute exactly zero.
    wc = jnp.pad(w_conv, ((0, 0), (0, 0), (0, 0), (0, cout_p - Cout)))
    wc = wc.reshape(KH * KW, Cin, cout_p).astype(jnp.bfloat16)
    bc = jnp.pad(b_conv, (0, cout_p - Cout)).reshape(1, cout_p).astype(jnp.float32)
    wf = jnp.pad(w_fc, ((0, cout_p - Cout), (0, nc_p - num_classes))).astype(jnp.float32)
    bf = jnp.pad(b_fc, (0, nc_p - num_classes)).reshape(1, nc_p).astype(jnp.float32)

    kernel = functools.partial(_conv_gap_fc_kernel, th=th, w=W, kh=KH, kw=KW,
                               inv_hw=1.0 / float(H * W))

    flops = 2 * N * H * W * KH * KW * Cin * cout_p + 2 * N * cout_p * nc_p
    bytes_accessed = int(slabs.size * 2 + wc.size * 2 + bc.size * 4
                         + wf.size * 4 + bf.size * 4 + N * nc_p * 4)

    out = pl.pallas_call(
        kernel,
        out_shape=jax.ShapeDtypeStruct((N, 1, nc_p), jnp.float32),
        grid_spec=pltpu.PrefetchScalarGridSpec(
            num_scalar_prefetch=0,
            grid=(N, rt),
            in_specs=[
                # haloed row slab for (sample n, row tile r)
                pl.BlockSpec((None, None, th + KH - 1, wp, Cin),
                             lambda n, r: (n, r, 0, 0, 0)),
                pl.BlockSpec((KH * KW, Cin, cout_p), lambda n, r: (0, 0, 0)),
                pl.BlockSpec((1, cout_p), lambda n, r: (0, 0)),
                pl.BlockSpec((cout_p, nc_p), lambda n, r: (0, 0)),
                pl.BlockSpec((1, nc_p), lambda n, r: (0, 0)),
            ],
            out_specs=pl.BlockSpec((None, 1, nc_p), lambda n, r: (n, 0, 0)),
            scratch_shapes=[pltpu.VMEM((1, cout_p), jnp.float32)],
        ),
        compiler_params=pltpu.CompilerParams(
            dimension_semantics=("parallel", "arbitrary"),
            vmem_limit_bytes=32 * 1024 * 1024),
        cost_estimate=pl.CostEstimate(flops=flops, transcendentals=0,
                                      bytes_accessed=bytes_accessed),
    )(slabs, wc, bc, wf, bf)

    return out[:, 0, :num_classes]


def _reference(x_nchw, w_conv, b_conv, w_fc, b_fc):
    """Pure-JAX reference (conv inputs cast through bf16 to mirror kernel)."""
    xb = x_nchw.astype(jnp.bfloat16).astype(jnp.float32)
    wb = w_conv.astype(jnp.bfloat16).astype(jnp.float32)
    feat = jax.lax.conv_general_dilated(
        xb, jnp.transpose(wb, (3, 2, 0, 1)),              # OIHW
        window_strides=(1, 1), padding="SAME",
        dimension_numbers=("NCHW", "OIHW", "NCHW"))
    feat = jnp.maximum(feat + b_conv[None, :, None, None], 0.0)
    gap = jnp.mean(feat, axis=(2, 3))                     # (N, Cout)
    return gap @ w_fc + b_fc[None, :]


if __name__ == "__main__":
    key = jax.random.PRNGKey(0)
    k_x, k_wc, k_bc, k_wf, k_bf = jax.random.split(key, 5)

    N, Cin, H, W = 2, 4, 16, 16        # small NCHW input, PyTorch convention
    Cout, num_classes = 32, 10         # num_ftrs -> num_classes head

    x = jax.random.normal(k_x, (N, Cin, H, W), dtype=jnp.float32)
    w_conv = jax.random.normal(k_wc, (3, 3, Cin, Cout), dtype=jnp.float32) * 0.1
    b_conv = jax.random.normal(k_bc, (Cout,), dtype=jnp.float32) * 0.1
    w_fc = jax.random.normal(k_wf, (Cout, num_classes), dtype=jnp.float32) * 0.1
    b_fc = jax.random.normal(k_bf, (num_classes,), dtype=jnp.float32) * 0.1

    # row_tile=8 -> 2 row tiles per sample, exercising the init/accumulate/
    # finalize path of the GAP scratch accumulator.
    out = torchvision_model_forward(x, w_conv, b_conv, w_fc, b_fc, row_tile=8)
    out = jax.block_until_ready(out)

    ref = _reference(x, w_conv, b_conv, w_fc, b_fc)
    assert out.shape == (N, num_classes)
    assert jnp.allclose(out, ref, atol=2e-2, rtol=2e-2), "mismatch vs reference"

    print("KERNEL_OK")
</pallas_src>

<mosaic_0001>
module attributes {stable_mosaic.version = 11 : i64} {
  func.func @_conv_gap_fc_kernel(%arg0: i32, %arg1: i32, %arg2: memref<1x1x10x18x4xbf16, #tpu.memory_space<vmem>>, %arg3: memref<9x4x128xbf16, #tpu.memory_space<vmem>>, %arg4: memref<1x128xf32, #tpu.memory_space<vmem>>, %arg5: memref<128x128xf32, #tpu.memory_space<vmem>>, %arg6: memref<1x128xf32, #tpu.memory_space<vmem>>, %arg7: memref<1x1x128xf32, #tpu.memory_space<vmem>>, %arg8: memref<1x128xf32, #tpu.memory_space<vmem>>) attributes {dimension_semantics = [#tpu.dimension_semantics<parallel>, #tpu.dimension_semantics<arbitrary>], iteration_bounds = array<i64: 2, 2>, scalar_prefetch = 0 : i64, scratch_operands = 1 : i64, tpu.core_type = #tpu.core_type<tc>, window_params = [{transform_indices = @transform_0, window_bounds = array<i64: 1, 1, 10, 18, 4>}, {pipeline_mode = #tpu.pipeline_mode<synchronous>, transform_indices = @transform_1, window_bounds = array<i64: 9, 4, 128>}, {pipeline_mode = #tpu.pipeline_mode<synchronous>, transform_indices = @transform_2, window_bounds = array<i64: 1, 128>}, {pipeline_mode = #tpu.pipeline_mode<synchronous>, transform_indices = @transform_3, window_bounds = array<i64: 128, 128>}, {pipeline_mode = #tpu.pipeline_mode<synchronous>, transform_indices = @transform_4, window_bounds = array<i64: 1, 128>}, {transform_indices = @transform_5, window_bounds = array<i64: 1, 1, 128>}]} {
    %c0_i32 = arith.constant 0 : i32
    %0 = arith.cmpi eq, %arg1, %c0_i32 : i32
    %1 = arith.extui %0 : i1 to i32
    %c0_i32_0 = arith.constant 0 : i32
    %2 = arith.cmpi ne, %1, %c0_i32_0 : i32
    scf.if %2 {
      %cst_82 = arith.constant 0.000000e+00 : f32
      %80 = vector.broadcast %cst_82 : f32 to vector<1x128xf32>
      %c0_83 = arith.constant 0 : index
      %c0_84 = arith.constant 0 : index
      %81 = vector.load %arg8[%c0_83, %c0_84] : memref<1x128xf32, #tpu.memory_space<vmem>>, vector<1x128xf32>
      tpu.vector_store %arg8[%c0_83, %c0_84], %80 {strides = array<i32>} : memref<1x128xf32, #tpu.memory_space<vmem>>, vector<1x128xf32>,
    } else {
    }
    %cst = arith.constant 0.000000e+00 : f32
    %3 = vector.broadcast %cst : f32 to vector<128x128xf32>
    %c0 = arith.constant 0 : index
    %c0_1 = arith.constant 0 : index
    %c0_2 = arith.constant 0 : index
    %c0_3 = arith.constant 0 : index
    %c0_4 = arith.constant 0 : index
    %4 = vector.load %arg2[%c0, %c0_1, %c0_2, %c0_3, %c0_4] : memref<1x1x10x18x4xbf16, #tpu.memory_space<vmem>>, vector<1x1x8x16x4xbf16>
    %5 = vector.shape_cast %4 : vector<1x1x8x16x4xbf16> to vector<8x16x4xbf16>
    %6 = vector.shape_cast %5 : vector<8x16x4xbf16> to vector<128x4xbf16>
    %c0_5 = arith.constant 0 : index
    %c0_6 = arith.constant 0 : index
    %c0_7 = arith.constant 0 : index
    %7 = vector.load %arg3[%c0_5, %c0_6, %c0_7] : memref<9x4x128xbf16, #tpu.memory_space<vmem>>, vector<1x4x128xbf16>
    %8 = vector.shape_cast %7 : vector<1x4x128xbf16> to vector<4x128xbf16>
    %cst_8 = arith.constant dense<0.000000e+00> : vector<128x128xf32>
    %9 = tpu.matmul %6, %8, %cst_8 {dimension_numbers = #tpu.dot_dimension_numbers<[1], [0], [0], [1], [0, 0, 1, 1], [], []>} : vector<128x4xbf16>, vector<4x128xbf16>, vector<128x128xf32> -> vector<128x128xf32>
    %10 = arith.addf %3, %9 : vector<128x128xf32>
    %c0_9 = arith.constant 0 : index
    %c0_10 = arith.constant 0 : index
    %c0_11 = arith.constant 0 : index
    %c1 = arith.constant 1 : index
    %c0_12 = arith.constant 0 : index
    %11 = vector.load %arg2[%c0_9, %c0_10, %c0_11, %c1, %c0_12] : memref<1x1x10x18x4xbf16, #tpu.memory_space<vmem>>, vector<1x1x8x16x4xbf16>
    %12 = vector.shape_cast %11 : vector<1x1x8x16x4xbf16> to vector<8x16x4xbf16>
    %13 = vector.shape_cast %12 : vector<8x16x4xbf16> to vector<128x4xbf16>
    %c1_13 = arith.constant 1 : index
    %c0_14 = arith.constant 0 : index
    %c0_15 = arith.constant 0 : index
    %14 = vector.load %arg3[%c1_13, %c0_14, %c0_15] : memref<9x4x128xbf16, #tpu.memory_space<vmem>>, vector<1x4x128xbf16>
    %15 = vector.shape_cast %14 : vector<1x4x128xbf16> to vector<4x128xbf16>
    %cst_16 = arith.constant dense<0.000000e+00> : vector<128x128xf32>
    %16 = tpu.matmul %13, %15, %cst_16 {dimension_numbers = #tpu.dot_dimension_numbers<[1], [0], [0], [1], [0, 0, 1, 1], [], []>} : vector<128x4xbf16>, vector<4x128xbf16>, vector<128x128xf32> -> vector<128x128xf32>
    %17 = arith.addf %10, %16 : vector<128x128xf32>
    %c0_17 = arith.constant 0 : index
    %c0_18 = arith.constant 0 : index
    %c0_19 = arith.constant 0 : index
    %c2 = arith.constant 2 : index
    %c0_20 = arith.constant 0 : index
    %18 = vector.load %arg2[%c0_17, %c0_18, %c0_19, %c2, %c0_20] : memref<1x1x10x18x4xbf16, #tpu.memory_space<vmem>>, vector<1x1x8x16x4xbf16>
    %19 = vector.shape_cast %18 : vector<1x1x8x16x4xbf16> to vector<8x16x4xbf16>
    %20 = vector.shape_cast %19 : vector<8x16x4xbf16> to vector<128x4xbf16>
    %c2_21 = arith.constant 2 : index
    %c0_22 = arith.constant 0 : index
    %c0_23 = arith.constant 0 : index
    %21 = vector.load %arg3[%c2_21, %c0_22, %c0_23] : memref<9x4x128xbf16, #tpu.memory_space<vmem>>, vector<1x4x128xbf16>
    %22 = vector.shape_cast %21 : vector<1x4x128xbf16> to vector<4x128xbf16>
    %cst_24 = arith.constant dense<0.000000e+00> : vector<128x128xf32>
    %23 = tpu.matmul %20, %22, %cst_24 {dimension_numbers = #tpu.dot_dimension_numbers<[1], [0], [0], [1], [0, 0, 1, 1], [], []>} : vector<128x4xbf16>, vector<4x128xbf16>, vector<128x128xf32> -> vector<128x128xf32>
    %24 = arith.addf %17, %23 : vector<128x128xf32>
    %c0_25 = arith.constant 0 : index
    %c0_26 = arith.constant 0 : index
    %c1_27 = arith.constant 1 : index
    %c0_28 = arith.constant 0 : index
    %c0_29 = arith.constant 0 : index
    %25 = vector.load %arg2[%c0_25, %c0_26, %c1_27, %c0_28, %c0_29] : memref<1x1x10x18x4xbf16, #tpu.memory_space<vmem>>, vector<1x1x8x16x4xbf16>
    %26 = vector.shape_cast %25 : vector<1x1x8x16x4xbf16> to vector<8x16x4xbf16>
    %27 = vector.shape_cast %26 : vector<8x16x4xbf16> to vector<128x4xbf16>
    %c3 = arith.constant 3 : index
    %c0_30 = arith.constant 0 : index
    %c0_31 = arith.constant 0 : index
    %28 = vector.load %arg3[%c3, %c0_30, %c0_31] : memref<9x4x128xbf16, #tpu.memory_space<vmem>>, vector<1x4x128xbf16>
    %29 = vector.shape_cast %28 : vector<1x4x128xbf16> to vector<4x128xbf16>
    %cst_32 = arith.constant dense<0.000000e+00> : vector<128x128xf32>
    %30 = tpu.matmul %27, %29, %cst_32 {dimension_numbers = #tpu.dot_dimension_numbers<[1], [0], [0], [1], [0, 0, 1, 1], [], []>} : vector<128x4xbf16>, vector<4x128xbf16>, vector<128x128xf32> -> vector<128x128xf32>
    %31 = arith.addf %24, %30 : vector<128x128xf32>
    %c0_33 = arith.constant 0 : index
    %c0_34 = arith.constant 0 : index
    %c1_35 = arith.constant 1 : index
    %c1_36 = arith.constant 1 : index
    %c0_37 = arith.constant 0 : index
    %32 = vector.load %arg2[%c0_33, %c0_34, %c1_35, %c1_36, %c0_37] : memref<1x1x10x18x4xbf16, #tpu.memory_space<vmem>>, vector<1x1x8x16x4xbf16>
    %33 = vector.shape_cast %32 : vector<1x1x8x16x4xbf16> to vector<8x16x4xbf16>
    %34 = vector.shape_cast %33 : vector<8x16x4xbf16> to vector<128x4xbf16>
    %c4 = arith.constant 4 : index
    %c0_38 = arith.constant 0 : index
    %c0_39 = arith.constant 0 : index
    %35 = vector.load %arg3[%c4, %c0_38, %c0_39] : memref<9x4x128xbf16, #tpu.memory_space<vmem>>, vector<1x4x128xbf16>
    %36 = vector.shape_cast %35 : vector<1x4x128xbf16> to vector<4x128xbf16>
    %cst_40 = arith.constant dense<0.000000e+00> : vector<128x128xf32>
    %37 = tpu.matmul %34, %36, %cst_40 {dimension_numbers = #tpu.dot_dimension_numbers<[1], [0], [0], [1], [0, 0, 1, 1], [], []>} : vector<128x4xbf16>, vector<4x128xbf16>, vector<128x128xf32> -> vector<128x128xf32>
    %38 = arith.addf %31, %37 : vector<128x128xf32>
    %c0_41 = arith.constant 0 : index
    %c0_42 = arith.constant 0 : index
    %c1_43 = arith.constant 1 : index
    %c2_44 = arith.constant 2 : index
    %c0_45 = arith.constant 0 : index
    %39 = vector.load %arg2[%c0_41, %c0_42, %c1_43, %c2_44, %c0_45] : memref<1x1x10x18x4xbf16, #tpu.memory_space<vmem>>, vector<1x1x8x16x4xbf16>
    %40 = vector.shape_cast %39 : vector<1x1x8x16x4xbf16> to vector<8x16x4xbf16>
    %41 = vector.shape_cast %40 : vector<8x16x4xbf16> to vector<128x4xbf16>
    %c5 = arith.constant 5 : index
    %c0_46 = arith.constant 0 : index
    %c0_47 = arith.constant 0 : index
    %42 = vector.load %arg3[%c5, %c0_46, %c0_47] : memref<9x4x128xbf16, #tpu.memory_space<vmem>>, vector<1x4x128xbf16>
    %43 = vector.shape_cast %42 : vector<1x4x128xbf16> to vector<4x128xbf16>
    %cst_48 = arith.constant dense<0.000000e+00> : vector<128x128xf32>
    %44 = tpu.matmul %41, %43, %cst_48 {dimension_numbers = #tpu.dot_dimension_numbers<[1], [0], [0], [1], [0, 0, 1, 1], [], []>} : vector<128x4xbf16>, vector<4x128xbf16>, vector<128x128xf32> -> vector<128x128xf32>
    %45 = arith.addf %38, %44 : vector<128x128xf32>
    %c0_49 = arith.constant 0 : index
    %c0_50 = arith.constant 0 : index
    %c2_51 = arith.constant 2 : index
    %c0_52 = arith.constant 0 : index
    %c0_53 = arith.constant 0 : index
    %46 = vector.load %arg2[%c0_49, %c0_50, %c2_51, %c0_52, %c0_53] : memref<1x1x10x18x4xbf16, #tpu.memory_space<vmem>>, vector<1x1x8x16x4xbf16>
    %47 = vector.shape_cast %46 : vector<1x1x8x16x4xbf16> to vector<8x16x4xbf16>
    %48 = vector.shape_cast %47 : vector<8x16x4xbf16> to vector<128x4xbf16>
    %c6 = arith.constant 6 : index
    %c0_54 = arith.constant 0 : index
    %c0_55 = arith.constant 0 : index
    %49 = vector.load %arg3[%c6, %c0_54, %c0_55] : memref<9x4x128xbf16, #tpu.memory_space<vmem>>, vector<1x4x128xbf16>
    %50 = vector.shape_cast %49 : vector<1x4x128xbf16> to vector<4x128xbf16>
    %cst_56 = arith.constant dense<0.000000e+00> : vector<128x128xf32>
    %51 = tpu.matmul %48, %50, %cst_56 {dimension_numbers = #tpu.dot_dimension_numbers<[1], [0], [0], [1], [0, 0, 1, 1], [], []>} : vector<128x4xbf16>, vector<4x128xbf16>, vector<128x128xf32> -> vector<128x128xf32>
    %52 = arith.addf %45, %51 : vector<128x128xf32>
    %c0_57 = arith.constant 0 : index
    %c0_58 = arith.constant 0 : index
    %c2_59 = arith.constant 2 : index
    %c1_60 = arith.constant 1 : index
    %c0_61 = arith.constant 0 : index
    %53 = vector.load %arg2[%c0_57, %c0_58, %c2_59, %c1_60, %c0_61] : memref<1x1x10x18x4xbf16, #tpu.memory_space<vmem>>, vector<1x1x8x16x4xbf16>
    %54 = vector.shape_cast %53 : vector<1x1x8x16x4xbf16> to vector<8x16x4xbf16>
    %55 = vector.shape_cast %54 : vector<8x16x4xbf16> to vector<128x4xbf16>
    %c7 = arith.constant 7 : index
    %c0_62 = arith.constant 0 : index
    %c0_63 = arith.constant 0 : index
    %56 = vector.load %arg3[%c7, %c0_62, %c0_63] : memref<9x4x128xbf16, #tpu.memory_space<vmem>>, vector<1x4x128xbf16>
    %57 = vector.shape_cast %56 : vector<1x4x128xbf16> to vector<4x128xbf16>
    %cst_64 = arith.constant dense<0.000000e+00> : vector<128x128xf32>
    %58 = tpu.matmul %55, %57, %cst_64 {dimension_numbers = #tpu.dot_dimension_numbers<[1], [0], [0], [1], [0, 0, 1, 1], [], []>} : vector<128x4xbf16>, vector<4x128xbf16>, vector<128x128xf32> -> vector<128x128xf32>
    %59 = arith.addf %52, %58 : vector<128x128xf32>
    %c0_65 = arith.constant 0 : index
    %c0_66 = arith.constant 0 : index
    %c2_67 = arith.constant 2 : index
    %c2_68 = arith.constant 2 : index
    %c0_69 = arith.constant 0 : index
    %60 = vector.load %arg2[%c0_65, %c0_66, %c2_67, %c2_68, %c0_69] : memref<1x1x10x18x4xbf16, #tpu.memory_space<vmem>>, vector<1x1x8x16x4xbf16>
    %61 = vector.shape_cast %60 : vector<1x1x8x16x4xbf16> to vector<8x16x4xbf16>
    %62 = vector.shape_cast %61 : vector<8x16x4xbf16> to vector<128x4xbf16>
    %c8 = arith.constant 8 : index
    %c0_70 = arith.constant 0 : index
    %c0_71 = arith.constant 0 : index
    %63 = vector.load %arg3[%c8, %c0_70, %c0_71] : memref<9x4x128xbf16, #tpu.memory_space<vmem>>, vector<1x4x128xbf16>
    %64 = vector.shape_cast %63 : vector<1x4x128xbf16> to vector<4x128xbf16>
    %cst_72 = arith.constant dense<0.000000e+00> : vector<128x128xf32>
    %65 = tpu.matmul %62, %64, %cst_72 {dimension_numbers = #tpu.dot_dimension_numbers<[1], [0], [0], [1], [0, 0, 1, 1], [], []>} : vector<128x4xbf16>, vector<4x128xbf16>, vector<128x128xf32> -> vector<128x128xf32>
    %66 = arith.addf %59, %65 : vector<128x128xf32>
    %c0_73 = arith.constant 0 : index
    %c0_74 = arith.constant 0 : index
    %67 = vector.load %arg4[%c0_73, %c0_74] : memref<1x128xf32, #tpu.memory_space<vmem>>, vector<1x128xf32>
    %68 = vector.broadcast %67 : vector<1x128xf32> to vector<128x128xf32>
    %69 = arith.addf %66, %68 : vector<128x128xf32>
    %cst_75 = arith.constant 0.000000e+00 : f32
    %70 = vector.broadcast %cst_75 : f32 to vector<128x128xf32>
    %71 = arith.maximumf %69, %70 : vector<128x128xf32>
    %c0_76 = arith.constant 0 : index
    %c0_77 = arith.constant 0 : index
    %72 = vector.load %arg8[%c0_76, %c0_77] : memref<1x128xf32, #tpu.memory_space<vmem>>, vector<1x128xf32>
    %cst_78 = arith.constant dense<0.000000e+00> : vector<128xf32>
    %73 = vector.multi_reduction <add>, %71, %cst_78 [0] : vector<128x128xf32> to vector<128xf32>
    %74 = vector.shape_cast %73 : vector<128xf32> to vector<1x128xf32>
    %75 = arith.addf %72, %74 : vector<1x128xf32>
    %c0_79 = arith.constant 0 : index
    %c0_80 = arith.constant 0 : index
    %76 = vector.load %arg8[%c0_79, %c0_80] : memref<1x128xf32, #tpu.memory_space<vmem>>, vector<1x128xf32>
    tpu.vector_store %arg8[%c0_79, %c0_80], %75 {strides = array<i32>} : memref<1x128xf32, #tpu.memory_space<vmem>>, vector<1x128xf32>,
    %c1_i32 = arith.constant 1 : i32
    %77 = arith.cmpi eq, %arg1, %c1_i32 : i32
    %78 = arith.extui %77 : i1 to i32
    %c0_i32_81 = arith.constant 0 : i32
    %79 = arith.cmpi ne, %78, %c0_i32_81 : i32
    scf.if %79 {
      %c0_82 = arith.constant 0 : index
      %c0_83 = arith.constant 0 : index
      %80 = vector.load %arg8[%c0_82, %c0_83] : memref<1x128xf32, #tpu.memory_space<vmem>>, vector<1x128xf32>
      %cst_84 = arith.constant 3.906250e-03 : f32
      %81 = vector.broadcast %cst_84 : f32 to vector<1x128xf32>
      %82 = arith.mulf %80, %81 : vector<1x128xf32>
      %c0_85 = arith.constant 0 : index
      %c0_86 = arith.constant 0 : index
      %83 = vector.load %arg5[%c0_85, %c0_86] : memref<128x128xf32, #tpu.memory_space<vmem>>, vector<128x128xf32>
      %cst_87 = arith.constant dense<0.000000e+00> : vector<1x128xf32>
      %84 = tpu.matmul %82, %83, %cst_87 {dimension_numbers = #tpu.dot_dimension_numbers<[1], [0], [0], [1], [0, 0, 1, 1], [], []>} : vector<1x128xf32>, vector<128x128xf32>, vector<1x128xf32> -> vector<1x128xf32>
      %c0_88 = arith.constant 0 : index
      %c0_89 = arith.constant 0 : index
      %85 = vector.load %arg6[%c0_88, %c0_89] : memref<1x128xf32, #tpu.memory_space<vmem>>, vector<1x128xf32>
      %86 = arith.addf %84, %85 : vector<1x128xf32>
      %c0_90 = arith.constant 0 : index
      %c0_91 = arith.constant 0 : index
      %c0_92 = arith.constant 0 : index
      %87 = vector.load %arg7[%c0_90, %c0_91, %c0_92] : memref<1x1x128xf32, #tpu.memory_space<vmem>>, vector<1x1x128xf32>
      %88 = vector.shape_cast %87 : vector<1x1x128xf32> to vector<1x128xf32>
      %89 = vector.shape_cast %86 : vector<1x128xf32> to vector<1x1x128xf32>
      tpu.vector_store %arg7[%c0_90, %c0_91, %c0_92], %89 {strides = array<i32>} : memref<1x1x128xf32, #tpu.memory_space<vmem>>, vector<1x1x128xf32>,
    } else {
    }
    return
  }
  func.func @transform_0(%arg0: i32, %arg1: i32) -> (i32, i32, i32, i32, i32) {
    %c0_i32 = arith.constant 0 : i32
    %c0_i32_0 = arith.constant 0 : i32
    %c0_i32_1 = arith.constant 0 : i32
    %c0_i32_2 = arith.constant 0 : i32
    return %arg0, %arg1, %c0_i32, %c0_i32_0, %c0_i32_1 : i32, i32, i32, i32, i32
  }
  func.func @transform_1(%arg0: i32, %arg1: i32) -> (i32, i32, i32) {
    %c0_i32 = arith.constant 0 : i32
    %c0_i32_0 = arith.constant 0 : i32
    %c0_i32_1 = arith.constant 0 : i32
    %c0_i32_2 = arith.constant 0 : i32
    return %c0_i32, %c0_i32_0, %c0_i32_1 : i32, i32, i32
  }
  func.func @transform_2(%arg0: i32, %arg1: i32) -> (i32, i32) {
    %c0_i32 = arith.constant 0 : i32
    %c0_i32_0 = arith.constant 0 : i32
    %c0_i32_1 = arith.constant 0 : i32
    return %c0_i32, %c0_i32_0 : i32, i32
  }
  func.func @transform_3(%arg0: i32, %arg1: i32) -> (i32, i32) {
    %c0_i32 = arith.constant 0 : i32
    %c0_i32_0 = arith.constant 0 : i32
    %c0_i32_1 = arith.constant 0 : i32
    return %c0_i32, %c0_i32_0 : i32, i32
  }
  func.func @transform_4(%arg0: i32, %arg1: i32) -> (i32, i32) {
    %c0_i32 = arith.constant 0 : i32
    %c0_i32_0 = arith.constant 0 : i32
    %c0_i32_1 = arith.constant 0 : i32
    return %c0_i32, %c0_i32_0 : i32, i32
  }
  func.func @transform_5(%arg0: i32, %arg1: i32) -> (i32, i32, i32) {
    %c0_i32 = arith.constant 0 : i32
    %c0_i32_0 = arith.constant 0 : i32
    %c0_i32_1 = arith.constant 0 : i32
    return %arg0, %c0_i32, %c0_i32_0 : i32, i32, i32
  }
}

</mosaic_0001>

<llo_original>
// kernel: tpu_custom_call.1
$region0: #{tpu_custom_call.1}
  #allocation0 [shape = 'u32[]', space=smem, size = 0x4, offset = 0x4, fixed_abs, tag = 'smem constant byte address 0x4 - core index']
  #allocation1 [shape = 'u32[144,128]{1,0:T(1,128)}', space=vmem, size = 0x12000, scoped, tag = 'internal scratch']
  #allocation2 [shape = 'f32[1,128]{1,0:T(1,128)}', space=vmem, size = 0x200, scoped, tag = 'scratch operand']
  %s0 = inlined_call_operand.vmem [shape: bf16[2,2,10,18,4], index: 0, kind: input, shape index: {}]
  %s1 = inlined_call_operand.vmem [shape: bf16[9,4,128], index: 1, kind: input, shape index: {}]
  %s2 = inlined_call_operand.vmem [shape: f32[1,128], index: 2, kind: input, shape index: {}]
  %s3 = inlined_call_operand.vmem [shape: f32[128,128], index: 3, kind: input, shape index: {}]
  %s4 = inlined_call_operand.vmem [shape: f32[1,128], index: 4, kind: input, shape index: {}]
  %s5 = inlined_call_operand.hbm [shape: f32[2,1,128], index: 5, kind: output, shape index: {}]
  %s6 = sld [smem:[#allocation0]]
  $region61: #{tpu_custom_call.1} parent=0
    _
  %s8 = ssub.s32 1, %s6
  %s9 = scalar_select 0, %s8, %s6
  $region1: #{tpu_custom_call.1} parent=0
    #allocation3 [shape = 'u8[1024]{0}', space=vmem, size = 0x400, scoped, tag = 'output window, operand 0']
    #allocation4 [shape = 's32[2]{0}', space=sflag, size = 0x8, scoped, tag = 'scoped memory for tpu_custom_call.1']
    %10 = vsyncpa [#allocation4], 0
    %s11 = scalar_lea.sflag [#allocation4], 1
    %12 = vsyncpa %s11, 0
    loop: start=0, step=1, limit=6
    $region2: #{tpu_custom_call.1} parent=1 // loop_pre_header
      _
    $region3: #{tpu_custom_call.1} parent=1 // loop_header
      %s14 = sphi 0, %s18
      %p15 = scmp.ge.s32.totalorder %s14, 6
      %s21 = sphi 0, %s33
      %s22 = sphi 0, %s29
      %s23 = sphi 0, %s21
      %s24 = sphi 0, %s22
      %s25 = sphi 0, %s23
      %s26 = sphi 0, %s24
      %s38 = sphi 0, %s40
      %s41 = sphi 0, %s38
      %s42 = sphi 0, %s41
      %s58 = sphi 0, %s42
      %s62 = sphi 0, %s62
      %s64 = sphi 0, %s62
      %s65 = sphi 0, %s64
      %s79 = sphi 0, %s65
      %s83 = sphi 0, %s83
      %s85 = sphi 0, %s83
      %s86 = sphi 0, %s85
      %s100 = sphi 0, %s86
      %s104 = sphi 0, %s104
      %s106 = sphi 0, %s104
      %s107 = sphi 0, %s106
      %s121 = sphi 0, %s107
      %s125 = sphi 0, %s125
      %s127 = sphi 0, %s125
      %s128 = sphi 0, %s127
      %s142 = sphi 0, %s128
      %s148 = sphi 0, %s150
      %s151 = sphi 0, %s148
      %s152 = sphi 0, %s151
      %s168 = sphi 0, %s152
    $region4: #{tpu_custom_call.1} parent=1 // loop_header_branch
      %17 = sbr.rel (%p15) target = $region8
    $region5: #{tpu_custom_call.1} parent=1 // loop_body
      %s19 = ssub.s32 %s14, 1
      %s20 = ssub.s32 %s14, 2
      %s27 = sadd.s32 1, %s22
      %p28 = scmp.ge.s32.totalorder %s27, 2
      %s29 = scalar_select %p28, 0, %s27
      %s30 = sadd.s32 1, %s21
      %s31 = scalar_select %p28, %s30, %s21
      %p32 = scmp.ge.s32.totalorder %s31, 2
      %s33 = scalar_select %p32, 0, %s31
      %s34 = ssub.s32 %s21, %s33
      %s35 = ssub.s32 %s22, %s29
      %s36 = sor.u32 %s34, %s35
      %p37 = scmp.eq.s32.totalorder %s36, 0
      %s39 = sadd.s32 %s38, 1
      %s40 = scalar_select %p37, %s38, %s39
      %p43 = pneg %p37
      %p44 = scmp.eq.s32.totalorder %s14, 3
      %p45 = por %p43, %p44
      %p46 = scmp.ne.s32.totalorder %s38, %s41
      %p47 = scmp.eq.s32.totalorder %s14, 0
      %p48 = por %p46, %p47
      %p49 = scmp.ne.s32.totalorder %s38, %s41
      %p50 = scmp.eq.s32.totalorder %s19, 3
      %p51 = por %p49, %p50
      %p52 = scmp.ne.s32.totalorder %s41, %s42
      %p53 = scmp.eq.s32.totalorder %s19, 0
      %p54 = por %p52, %p53
      %p55 = scmp.ne.s32.totalorder %s41, %s42
      %p56 = scmp.eq.s32.totalorder %s20, 3
      %p57 = por %p55, %p56
      %p59 = scmp.ne.s32.totalorder %s42, %s58
      %p60 = scmp.eq.s32.totalorder %s20, 0
      %p61 = por %p59, %p60
      %s63 = sadd.s32 %s62, 1
      %p66 = scmp.eq.s32.totalorder %s14, 3
      %p67 = scmp.ne.s32.totalorder %s62, %s64
      %p68 = scmp.eq.s32.totalorder %s14, 0
      %p69 = por %p67, %p68
      %p70 = scmp.ne.s32.totalorder %s62, %s64
      %p71 = scmp.eq.s32.totalorder %s19, 3
      %p72 = por %p70, %p71
      %p73 = scmp.ne.s32.totalorder %s64, %s65
      %p74 = scmp.eq.s32.totalorder %s19, 0
      %p75 = por %p73, %p74
      %p76 = scmp.ne.s32.totalorder %s64, %s65
      %p77 = scmp.eq.s32.totalorder %s20, 3
      %p78 = por %p76, %p77
      %p80 = scmp.ne.s32.totalorder %s65, %s79
      %p81 = scmp.eq.s32.totalorder %s20, 0
      %p82 = por %p80, %p81
      %s84 = sadd.s32 %s83, 1
      %p87 = scmp.eq.s32.totalorder %s14, 3
      %p88 = scmp.ne.s32.totalorder %s83, %s85
      %p89 = scmp.eq.s32.totalorder %s14, 0
      %p90 = por %p88, %p89
      %p91 = scmp.ne.s32.totalorder %s83, %s85
      %p92 = scmp.eq.s32.totalorder %s19, 3
      %p93 = por %p91, %p92
      %p94 = scmp.ne.s32.totalorder %s85, %s86
      %p95 = scmp.eq.s32.totalorder %s19, 0
      %p96 = por %p94, %p95
      %p97 = scmp.ne.s32.totalorder %s85, %s86
      %p98 = scmp.eq.s32.totalorder %s20, 3
      %p99 = por %p97, %p98
      %p101 = scmp.ne.s32.totalorder %s86, %s100
      %p102 = scmp.eq.s32.totalorder %s20, 0
      %p103 = por %p101, %p102
      %s105 = sadd.s32 %s104, 1
      %p108 = scmp.eq.s32.totalorder %s14, 3
      %p109 = scmp.ne.s32.totalorder %s104, %s106
      %p110 = scmp.eq.s32.totalorder %s14, 0
      %p111 = por %p109, %p110
      %p112 = scmp.ne.s32.totalorder %s104, %s106
      %p113 = scmp.eq.s32.totalorder %s19, 3
      %p114 = por %p112, %p113
      %p115 = scmp.ne.s32.totalorder %s106, %s107
      %p116 = scmp.eq.s32.totalorder %s19, 0
      %p117 = por %p115, %p116
      %p118 = scmp.ne.s32.totalorder %s106, %s107
      %p119 = scmp.eq.s32.totalorder %s20, 3
      %p120 = por %p118, %p119
      %p122 = scmp.ne.s32.totalorder %s107, %s121
      %p123 = scmp.eq.s32.totalorder %s20, 0
      %p124 = por %p122, %p123
      %s126 = sadd.s32 %s125, 1
      %p129 = scmp.eq.s32.totalorder %s14, 3
      %p130 = scmp.ne.s32.totalorder %s125, %s127
      %p131 = scmp.eq.s32.totalorder %s14, 0
      %p132 = por %p130, %p131
      %p133 = scmp.ne.s32.totalorder %s125, %s127
      %p134 = scmp.eq.s32.totalorder %s19, 3
      %p135 = por %p133, %p134
      %p136 = scmp.ne.s32.totalorder %s127, %s128
      %p137 = scmp.eq.s32.totalorder %s19, 0
      %p138 = por %p136, %p137
      %p139 = scmp.ne.s32.totalorder %s127, %s128
      %p140 = scmp.eq.s32.totalorder %s20, 3
      %p141 = por %p139, %p140
      %p143 = scmp.ne.s32.totalorder %s128, %s142
      %p144 = scmp.eq.s32.totalorder %s20, 0
      %p145 = por %p143, %p144
      %s146 = ssub.s32 %s21, %s33
      %p147 = scmp.eq.s32.totalorder %s146, 0
      %s149 = sadd.s32 %s148, 1
      %s150 = scalar_select %p147, %s148, %s149
      %p153 = pneg %p147
      %p154 = scmp.eq.s32.totalorder %s14, 3
      %p155 = por %p153, %p154
      %p156 = scmp.ne.s32.totalorder %s148, %s151
      %p157 = scmp.eq.s32.totalorder %s14, 0
      %p158 = por %p156, %p157
      %p159 = scmp.ne.s32.totalorder %s148, %s151
      %p160 = scmp.eq.s32.totalorder %s19, 3
      %p161 = por %p159, %p160
      %p162 = scmp.ne.s32.totalorder %s151, %s152
      %p163 = scmp.eq.s32.totalorder %s19, 0
      %p164 = por %p162, %p163
      %p165 = scmp.ne.s32.totalorder %s151, %s152
      %p166 = scmp.eq.s32.totalorder %s20, 3
      %p167 = por %p165, %p166
      %p169 = scmp.ne.s32.totalorder %s152, %s168
      %p170 = scmp.eq.s32.totalorder %s20, 0
      %p171 = por %p169, %p170
      %p172 = scmp.le.s32.totalorder 1, %s14
      %p173 = scmp.lt.s32.totalorder %s14, 5
      %p174 = pnand %p172, %p173
      %p175 = pneg %p174
      // Predicated region
      $region9: #{tpu_custom_call.1} parent=5 // pred_check
        _
      $region10: #{tpu_custom_call.1} parent=5 // pred_check_branch
        %177 = sbr.rel (%p174) target = $region12
      $region11: #{tpu_custom_call.1} parent=5 // pred_region
        %s178 = ssub.s32 %s14, 1
        // Predicated region
        $region13: #{tpu_custom_call.1} parent=11 // pred_check
          %p179 = pneg %p75
        $region14: #{tpu_custom_call.1} parent=11 // pred_check_branch
          %181 = sbr.rel (%p179) target = $region16
        $region15: #{tpu_custom_call.1} parent=11 // pred_region
          _
        $region16: #{tpu_custom_call.1} parent=11 // pred_fallthru
          _
        // Predicated region
        $region17: #{tpu_custom_call.1} parent=11 // pred_check
          %p182 = pneg %p96
        $region18: #{tpu_custom_call.1} parent=11 // pred_check_branch
          %184 = sbr.rel (%p182) target = $region20
        $region19: #{tpu_custom_call.1} parent=11 // pred_region
          _
        $region20: #{tpu_custom_call.1} parent=11 // pred_fallthru
          _
        // Predicated region
        $region21: #{tpu_custom_call.1} parent=11 // pred_check
          %p185 = pneg %p117
        $region22: #{tpu_custom_call.1} parent=11 // pred_check_branch
          %187 = sbr.rel (%p185) target = $region24
        $region23: #{tpu_custom_call.1} parent=11 // pred_region
          _
        $region24: #{tpu_custom_call.1} parent=11 // pred_fallthru
          _
        // Predicated region
        $region25: #{tpu_custom_call.1} parent=11 // pred_check
          %p188 = pneg %p138
        $region26: #{tpu_custom_call.1} parent=11 // pred_check_branch
          %190 = sbr.rel (%p188) target = $region28
        $region27: #{tpu_custom_call.1} parent=11 // pred_region
          _
        $region28: #{tpu_custom_call.1} parent=11 // pred_fallthru
          _
      $region12: #{tpu_custom_call.1} parent=5 // pred_fallthru
        _
      %p191 = scmp.lt.s32.totalorder %s14, 4
      // Predicated region
      $region29: #{tpu_custom_call.1} parent=5 // pred_check
        %p192 = pneg %p191
      $region30: #{tpu_custom_call.1} parent=5 // pred_check_branch
        %194 = sbr.rel (%p192) target = $region32
      $region31: #{tpu_custom_call.1} parent=5 // pred_region
        // Predicated region
        $region33: #{tpu_custom_call.1} parent=31 // pred_check
          %p195 = pneg %p48
        $region34: #{tpu_custom_call.1} parent=31 // pred_check_branch
          %197 = sbr.rel (%p195) target = $region36
        $region35: #{tpu_custom_call.1} parent=31 // pred_region
          %p198 = scmp.lt.s32.totalorder %s21, 1
          %s199 = scalar_select %p198, %s21, 1
          %p200 = scmp.lt.s32.totalorder %s22, 1
          %s201 = scalar_select %p200, %s22, 1
          %s202 = smul.addr %s201, 30
          %s203 = smul.addr %s199, 60
          %s204 = sadd.s32 %s202, %s203
          %s205 = smul.addr %s204, 4
          %s206 = scalar_lea.vmem %s0, %s205
        $region36: #{tpu_custom_call.1} parent=31 // pred_fallthru
          _
      $region32: #{tpu_custom_call.1} parent=5 // pred_fallthru
        _
      %p207 = scmp.le.s32.totalorder 1, %s14
      %p208 = scmp.lt.s32.totalorder %s14, 5
      %p209 = pnand %p207, %p208
      %p210 = pneg %p209
      // Predicated region
      $region37: #{tpu_custom_call.1} parent=5 // pred_check
        _
      $region38: #{tpu_custom_call.1} parent=5 // pred_check_branch
        %212 = sbr.rel (%p209) target = $region40
      $region39: #{tpu_custom_call.1} parent=5 // pred_region
        %s213 = ssub.s32 %s14, 1
        %p214 = scmp.lt.s32.totalorder %s23, 1
        %s215 = scalar_select %p214, %s23, 1
        %p216 = scmp.lt.s32.totalorder %s24, 1
        %s217 = scalar_select %p216, %s24, 1
        %s218 = smul.addr %s217, 30
        %s219 = smul.addr %s215, 60
        %s220 = sadd.s32 %s218, %s219
        %s221 = smul.addr %s220, 4
        %s222 = scalar_lea.vmem %s0, %s221
        %p223 = pneg %p54
        %p224 = pneg %p51
        %p225 = pneg %p75
        %p226 = pneg %p72
        %p227 = pneg %p96
        %p228 = pneg %p93
        %p229 = pneg %p117
        %p230 = pneg %p114
        %p231 = pneg %p138
        %p232 = pneg %p135
        %p233 = pneg %p164
        %p234 = pneg %p161
        %s235 = sand.u32 %s151, 1
        %s236 = scalar_lea.sflag [#allocation4], %s235
        %s237 = sand.u32 %s151, 1
        %s238 = scalar_lea.vmem [#allocation3], %s237
        %p239 = scmp.lt.s32.totalorder %s23, 1
        %s240 = scalar_select %p239, %s23, 1
        %p241 = scmp.lt.s32.totalorder %s24, 1
        %s242 = scalar_select %p241, %s24, 1
        %s243 = smul.addr %s242, 30
        %s244 = smul.addr %s240, 60
        %s245 = sadd.s32 %s243, %s244
        %s246 = smul.addr %s245, 4
        %s247 = scalar_lea.vmem %s0, %s246
        %p249 = scmp.eq.s32.totalorder %s24, 0
        // Predicated region
        $region41: #{tpu_custom_call.1} parent=39 // pred_check
          %p250 = pneg %p249
        $region42: #{tpu_custom_call.1} parent=39 // pred_check_branch
          %252 = sbr.rel (%p250) target = $region44
        $region43: #{tpu_custom_call.1} parent=39 // pred_region
          %253 = vst [vmem:[#allocation2] sm:$0x1] 0.0
        $region44: #{tpu_custom_call.1} parent=39 // pred_fallthru
          _
        %v254 = vld [vmem:[%s247] sm:$0xf]
        %v255 = vld [vmem:[%s247 + $0x4] sm:$0xf]
        %v256 = vld [vmem:[%s247 + $0xc] sm:$0xf]
        %v257 = vld [vmem:[%s247 + $0x10] sm:$0xf]
        %v258 = vld [vmem:[%s247 + $0x18] sm:$0xf]
        %v259 = vld [vmem:[%s247 + $0x1c] sm:$0xf]
        %v260 = vld [vmem:[%s247 + $0x24] sm:$0xf]
        %v261 = vld [vmem:[%s247 + $0x28] sm:$0xf]
        %v262 = vld [vmem:[%s247 + $0x30] sm:$0xf]
        %v263 = vld [vmem:[%s247 + $0x34] sm:$0xf]
        %v264 = vld [vmem:[%s247 + $0x3c] sm:$0xf]
        %v265 = vld [vmem:[%s247 + $0x40] sm:$0xf]
        %v266 = vld [vmem:[%s247 + $0x48] sm:$0xf]
        %v267 = vld [vmem:[%s247 + $0x4c] sm:$0xf]
        %v268 = vld [vmem:[%s247 + $0x54] sm:$0xf]
        %v269 = vld [vmem:[%s247 + $0x58] sm:$0xf]
        %v270 = vld [vmem:[%s1] sm:$0x3]
        %v271 = vld [vmem:[%s247 + $0x8] sm:$0x1]
        %v272 = vld [vmem:[%s247 + $0x14] sm:$0x1]
        %v273 = vld [vmem:[%s247 + $0x20] sm:$0x1]
        %v274 = vld [vmem:[%s247 + $0x2c] sm:$0x1]
        %v275 = vld [vmem:[%s247 + $0x38] sm:$0x1]
        %v276 = vld [vmem:[%s247 + $0x44] sm:$0x1]
        %v277 = vld [vmem:[%s247 + $0x50] sm:$0x1]
        %v278 = vld [vmem:[%s247 + $0x5c] sm:$0x1]
        %vm279 = vsmask.f32 3328
        %vm280 = vsmask.f32 7440
        %vm281 = vmor %vm279, %vm280
        %v283 = vshrl.u32 %v254, 16
        %v285 = vrot.slane %v283, 4
        %v286 = vshll.u32 %v254, 16
        %v288 = vrot.slane %v286, 5
        %v289 = vor.u32 %v285, %v288
        %v290 = vrot.slane %v289, 4
        %v292 = vshll.u32 %v255, 16
        %v294 = vrot.slane %v292, 5
        %v295 = vsel %vm281, %v290, %v294
        %v296 = vshrl.u32 %v255, 16
        %v298 = vrot.slane %v296, 4
        %v299 = vor.u32 %v298, %v294
        %v300 = vrot.slane %v299, 4
        %v302 = vshll.u32 %v271, 16
        %v304 = vrot.slane %v302, 5
        %v305 = vsel %vm281, %v300, %v304
        %v307 = vshrl.u32 %v256, 16
        %v309 = vrot.slane %v307, 4
        %v310 = vshll.u32 %v256, 16
        %v312 = vrot.slane %v310, 5
        %v313 = vor.u32 %v309, %v312
        %v314 = vrot.slane %v313, 4
        %v316 = vshll.u32 %v257, 16
        %v318 = vrot.slane %v316, 5
        %v319 = vsel %vm281, %v314, %v318
        %v320 = vshrl.u32 %v257, 16
        %v322 = vrot.slane %v320, 4
        %v323 = vor.u32 %v322, %v318
        %v324 = vrot.slane %v323, 4
        %v326 = vshll.u32 %v272, 16
        %v328 = vrot.slane %v326, 5
        %v329 = vsel %vm281, %v324, %v328
        %v331 = vshrl.u32 %v258, 16
        %v333 = vrot.slane %v331, 4
        %v334 = vshll.u32 %v258, 16
        %v336 = vrot.slane %v334, 5
        %v337 = vor.u32 %v333, %v336
        %v338 = vrot.slane %v337, 4
        %v340 = vshll.u32 %v259, 16
        %v342 = vrot.slane %v340, 5
        %v343 = vsel %vm281, %v338, %v342
        %v344 = vshrl.u32 %v259, 16
        %v346 = vrot.slane %v344, 4
        %v347 = vor.u32 %v346, %v342
        %v348 = vrot.slane %v347, 4
        %v350 = vshll.u32 %v273, 16
        %v352 = vrot.slane %v350, 5
        %v353 = vsel %vm281, %v348, %v352
        %v355 = vshrl.u32 %v260, 16
        %v357 = vrot.slane %v355, 4
        %v358 = vshll.u32 %v260, 16
        %v360 = vrot.slane %v358, 5
        %v361 = vor.u32 %v357, %v360
        %v362 = vrot.slane %v361, 4
        %v364 = vshll.u32 %v261, 16
        %v366 = vrot.slane %v364, 5
        %v367 = vsel %vm281, %v362, %v366
        %v368 = vshrl.u32 %v261, 16
        %v370 = vrot.slane %v368, 4
        %v371 = vor.u32 %v370, %v366
        %v372 = vrot.slane %v371, 4
        %v374 = vshll.u32 %v274, 16
        %v376 = vrot.slane %v374, 5
        %v377 = vsel %vm281, %v372, %v376
        %v379 = vshrl.u32 %v262, 16
        %v381 = vrot.slane %v379, 4
        %v382 = vshll.u32 %v262, 16
        %v384 = vrot.slane %v382, 5
        %v385 = vor.u32 %v381, %v384
        %v386 = vrot.slane %v385, 4
        %v388 = vshll.u32 %v263, 16
        %v390 = vrot.slane %v388, 5
        %v391 = vsel %vm281, %v386, %v390
        %v392 = vshrl.u32 %v263, 16
        %v394 = vrot.slane %v392, 4
        %v395 = vor.u32 %v394, %v390
        %v396 = vrot.slane %v395, 4
        %v398 = vshll.u32 %v275, 16
        %v400 = vrot.slane %v398, 5
        %v401 = vsel %vm281, %v396, %v400
        %v403 = vshrl.u32 %v264, 16
        %v405 = vrot.slane %v403, 4
        %v406 = vshll.u32 %v264, 16
        %v408 = vrot.slane %v406, 5
        %v409 = vor.u32 %v405, %v408
        %v410 = vrot.slane %v409, 4
        %v412 = vshll.u32 %v265, 16
        %v414 = vrot.slane %v412, 5
        %v415 = vsel %vm281, %v410, %v414
        %v416 = vshrl.u32 %v265, 16
        %v418 = vrot.slane %v416, 4
        %v419 = vor.u32 %v418, %v414
        %v420 = vrot.slane %v419, 4
        %v422 = vshll.u32 %v276, 16
        %v424 = vrot.slane %v422, 5
        %v425 = vsel %vm281, %v420, %v424
        %v427 = vshrl.u32 %v266, 16
        %v429 = vrot.slane %v427, 4
        %v430 = vshll.u32 %v266, 16
        %v432 = vrot.slane %v430, 5
        %v433 = vor.u32 %v429, %v432
        %v434 = vrot.slane %v433, 4
        %v436 = vshll.u32 %v267, 16
        %v438 = vrot.slane %v436, 5
        %v439 = vsel %vm281, %v434, %v438
        %v440 = vshrl.u32 %v267, 16
        %v442 = vrot.slane %v440, 4
        %v443 = vor.u32 %v442, %v438
        %v444 = vrot.slane %v443, 4
        %v446 = vshll.u32 %v277, 16
        %v448 = vrot.slane %v446, 5
        %v449 = vsel %vm281, %v444, %v448
        %v451 = vshrl.u32 %v268, 16
        %v453 = vrot.slane %v451, 4
        %v454 = vshll.u32 %v268, 16
        %v456 = vrot.slane %v454, 5
        %v457 = vor.u32 %v453, %v456
        %v458 = vrot.slane %v457, 4
        %v460 = vshll.u32 %v269, 16
        %v462 = vrot.slane %v460, 5
        %v463 = vsel %vm281, %v458, %v462
        %v464 = vshrl.u32 %v269, 16
        %v466 = vrot.slane %v464, 4
        %v467 = vor.u32 %v466, %v462
        %v468 = vrot.slane %v467, 4
        %v470 = vshll.u32 %v278, 16
        %v472 = vrot.slane %v470, 5
        %v473 = vsel %vm281, %v468, %v472
        %s474 = scalar_lea.vmem %s1, 2
        %v475 = vld [vmem:[%s474] sm:$0x3]
        %v476 = vunpack.c.l.b16 %v295
        %v477 = vunpack.c.l.b16 %v305
        %v478 = vunpack.c.l.b16 %v319
        %v479 = vunpack.c.l.b16 %v329
        %v480 = vunpack.c.l.b16 %v343
        %v481 = vunpack.c.l.b16 %v353
        %v482 = vunpack.c.l.b16 %v367
        %v483 = vunpack.c.l.b16 %v377
        %v484 = vunpack.c.l.b16 %v391
        %v485 = vunpack.c.l.b16 %v401
        %v486 = vunpack.c.l.b16 %v415
        %v487 = vunpack.c.l.b16 %v425
        %v488 = vunpack.c.l.b16 %v439
        %v489 = vunpack.c.l.b16 %v449
        %v490 = vunpack.c.l.b16 %v463
        %v491 = vunpack.c.l.b16 %v473
        %v492 = vpack.c.b16 %v477, %v476
        %v493 = vpack.c.b16 %v479, %v478
        %v494 = vpack.c.b16 %v481, %v480
        %v495 = vpack.c.b16 %v483, %v482
        %v496 = vpack.c.b16 %v485, %v484
        %v497 = vpack.c.b16 %v487, %v486
        %v498 = vpack.c.b16 %v489, %v488
        %v499 = vpack.c.b16 %v491, %v490
        %vm500 = vcmask 31744
        %v502 = vsel %vm500, %v492, 0
        %v505 = vsel %vm500, %v493, 0
        %v508 = vsel %vm500, %v494, 0
        %v511 = vsel %vm500, %v495, 0
        %v514 = vsel %vm500, %v496, 0
        %v517 = vsel %vm500, %v497, 0
        %v520 = vsel %vm500, %v498, 0
        %v523 = vsel %vm500, %v499, 0
        %vm525 = vcmask 1041408
        %v527 = vsel %vm525, %v475, 0
        %529 = vmatprep.subr.bf16.mxu0 0
        %530 = vmatpush1.bf16.msra.mxu0 %v527
        %531 = vmatprep.subr.bf16.mxu0 0
        %532 = vmatpush1.bf16.msra.mxu0 0
        %533 = vmatprep.subr.bf16.mxu0 0
        %534 = vmatpush1.bf16.msra.mxu0 0
        %535 = vmatprep.subr.bf16.mxu0 0
        %536 = vmatpush1.bf16.msra.mxu0 0
        %537 = vmatprep.subr.bf16.mxu0 0
        %538 = vmatpush1.bf16.msra.mxu0 0
        %539 = vmatprep.subr.bf16.mxu0 0
        %540 = vmatpush1.bf16.msra.mxu0 0
        %541 = vmatprep.subr.bf16.mxu0 0
        %542 = vmatpush1.bf16.msra.mxu0 0
        %543 = vmatprep.subr.bf16.mxu0 0
        %544 = vmatpush1.bf16.msra.mxu0 0
        %545 = vmatprep.subr.bf16.mxu0 0
        %546 = vmatpush1.bf16.msra.mxu0 0
        %547 = vmatprep.subr.bf16.mxu0 0
        %548 = vmatpush1.bf16.msra.mxu0 0
        %549 = vmatprep.subr.bf16.mxu0 0
        %550 = vmatpush1.bf16.msra.mxu0 0
        %551 = vmatprep.subr.bf16.mxu0 0
        %552 = vmatpush1.bf16.msra.mxu0 0
        %553 = vmatprep.subr.bf16.mxu0 0
        %554 = vmatpush1.bf16.msra.mxu0 0
        %555 = vmatprep.subr.bf16.mxu0 0
        %556 = vmatpush1.bf16.msra.mxu0 0
        %557 = vmatprep.subr.bf16.mxu0 0
        %558 = vmatpush1.bf16.msra.mxu0 0
        %559 = vmatprep.subr.bf16.mxu0 0
        %560 = vmatpush1.bf16.msra.mxu0 0
        %561 = vmatprep.mubr.bf16.mxu0 0
        %562 = vmatmul.mubr.bf16.gmra.mrb[0].mxu0 %v502
        %v563 = vpop.f32.mrb[0].mxu0
        %v564 = vadd.f32 0.0, %v563
        %v565 = vpop.f32.mrb[0].mxu0
        %v566 = vpop.f32.mrb[0].mxu0
        %v567 = vadd.f32 0.0, %v566
        %v568 = vpop.f32.mrb[0].mxu0
        %569 = vmatprep.mubr.bf16.mxu0 0
        %570 = vmatmul.mubr.bf16.gmra.mrb[0].mxu0 %v505
        %v571 = vpop.f32.mrb[0].mxu0
        %v572 = vadd.f32 0.0, %v571
        %v573 = vpop.f32.mrb[0].mxu0
        %v574 = vpop.f32.mrb[0].mxu0
        %v575 = vadd.f32 0.0, %v574
        %v576 = vpop.f32.mrb[0].mxu0
        %577 = vmatprep.mubr.bf16.mxu0 0
        %578 = vmatmul.mubr.bf16.gmra.mrb[0].mxu0 %v508
        %v579 = vpop.f32.mrb[0].mxu0
        %v580 = vadd.f32 0.0, %v579
        %v581 = vpop.f32.mrb[0].mxu0
        %v582 = vpop.f32.mrb[0].mxu0
        %v583 = vadd.f32 0.0, %v582
        %v584 = vpop.f32.mrb[0].mxu0
        %585 = vmatprep.mubr.bf16.mxu0 0
        %586 = vmatmul.mubr.bf16.gmra.mrb[0].mxu0 %v511
        %v587 = vpop.f32.mrb[0].mxu0
        %v588 = vadd.f32 0.0, %v587
        %v589 = vpop.f32.mrb[0].mxu0
        %v590 = vpop.f32.mrb[0].mxu0
        %v591 = vadd.f32 0.0, %v590
        %v592 = vpop.f32.mrb[0].mxu0
        %593 = vmatprep.mubr.bf16.mxu0 0
        %594 = vmatmul.mubr.bf16.gmra.mrb[0].mxu0 %v514
        %v595 = vpop.f32.mrb[0].mxu0
        %v596 = vadd.f32 0.0, %v595
        %v597 = vpop.f32.mrb[0].mxu0
        %v598 = vpop.f32.mrb[0].mxu0
        %v599 = vadd.f32 0.0, %v598
        %v600 = vpop.f32.mrb[0].mxu0
        %601 = vmatprep.mubr.bf16.mxu0 0
        %602 = vmatmul.mubr.bf16.gmra.mrb[0].mxu0 %v517
        %v603 = vpop.f32.mrb[0].mxu0
        %v604 = vadd.f32 0.0, %v603
        %v605 = vpop.f32.mrb[0].mxu0
        %v606 = vpop.f32.mrb[0].mxu0
        %v607 = vadd.f32 0.0, %v606
        %v608 = vpop.f32.mrb[0].mxu0
        %609 = vmatprep.mubr.bf16.mxu0 0
        %610 = vmatmul.mubr.bf16.gmra.mrb[0].mxu0 %v520
        %v611 = vpop.f32.mrb[0].mxu0
        %v612 = vadd.f32 0.0, %v611
        %v613 = vpop.f32.mrb[0].mxu0
        %v614 = vpop.f32.mrb[0].mxu0
        %v615 = vadd.f32 0.0, %v614
        %v616 = vpop.f32.mrb[0].mxu0
        %617 = vmatprep.mubr.bf16.mxu0 0
        %618 = vmatmul.mubr.bf16.gmra.mrb[0].mxu0 %v523
        %v619 = vpop.f32.mrb[0].mxu0
        %v620 = vadd.f32 0.0, %v619
        %v621 = vpop.f32.mrb[0].mxu0
        %v622 = vpop.f32.mrb[0].mxu0
        %v623 = vadd.f32 0.0, %v622
        %v624 = vpop.f32.mrb[0].mxu0
        %625 = vdwg.mxu0
        %v642 = vunpack.c.l.b16 %v254
        %v643 = vunpack.c.l.b16 %v255
        %v644 = vunpack.c.l.b16 %v256
        %v645 = vunpack.c.l.b16 %v257
        %v646 = vunpack.c.l.b16 %v258
        %v647 = vunpack.c.l.b16 %v259
        %v648 = vunpack.c.l.b16 %v260
        %v649 = vunpack.c.l.b16 %v261
        %v650 = vunpack.c.l.b16 %v262
        %v651 = vunpack.c.l.b16 %v263
        %v652 = vunpack.c.l.b16 %v264
        %v653 = vunpack.c.l.b16 %v265
        %v654 = vunpack.c.l.b16 %v266
        %v655 = vunpack.c.l.b16 %v267
        %v656 = vunpack.c.l.b16 %v268
        %v657 = vunpack.c.l.b16 %v269
        %v658 = vpack.c.b16 %v643, %v642
        %v659 = vpack.c.b16 %v645, %v644
        %v660 = vpack.c.b16 %v647, %v646
        %v661 = vpack.c.b16 %v649, %v648
        %v662 = vpack.c.b16 %v651, %v650
        %v663 = vpack.c.b16 %v653, %v652
        %v664 = vpack.c.b16 %v655, %v654
        %v665 = vpack.c.b16 %v657, %v656
        %v667 = vsel %vm500, %v658, 0
        %v670 = vsel %vm500, %v659, 0
        %v673 = vsel %vm500, %v660, 0
        %v676 = vsel %vm500, %v661, 0
        %v679 = vsel %vm500, %v662, 0
        %v682 = vsel %vm500, %v663, 0
        %v685 = vsel %vm500, %v664, 0
        %v688 = vsel %vm500, %v665, 0
        %v691 = vsel %vm525, %v270, 0
        %693 = vmatprep.subr.bf16.mxu0 0
        %694 = vmatpush1.bf16.msra.mxu0 %v691
        %695 = vmatprep.subr.bf16.mxu0 0
        %696 = vmatpush1.bf16.msra.mxu0 0
        %697 = vmatprep.subr.bf16.mxu0 0
        %698 = vmatpush1.bf16.msra.mxu0 0
        %699 = vmatprep.subr.bf16.mxu0 0
        %700 = vmatpush1.bf16.msra.mxu0 0
        %701 = vmatprep.subr.bf16.mxu0 0
        %702 = vmatpush1.bf16.msra.mxu0 0
        %703 = vmatprep.subr.bf16.mxu0 0
        %704 = vmatpush1.bf16.msra.mxu0 0
        %705 = vmatprep.subr.bf16.mxu0 0
        %706 = vmatpush1.bf16.msra.mxu0 0
        %707 = vmatprep.subr.bf16.mxu0 0
        %708 = vmatpush1.bf16.msra.mxu0 0
        %709 = vmatprep.subr.bf16.mxu0 0
        %710 = vmatpush1.bf16.msra.mxu0 0
        %711 = vmatprep.subr.bf16.mxu0 0
        %712 = vmatpush1.bf16.msra.mxu0 0
        %713 = vmatprep.subr.bf16.mxu0 0
        %714 = vmatpush1.bf16.msra.mxu0 0
        %715 = vmatprep.subr.bf16.mxu0 0
        %716 = vmatpush1.bf16.msra.mxu0 0
        %717 = vmatprep.subr.bf16.mxu0 0
        %718 = vmatpush1.bf16.msra.mxu0 0
        %719 = vmatprep.subr.bf16.mxu0 0
        %720 = vmatpush1.bf16.msra.mxu0 0
        %721 = vmatprep.subr.bf16.mxu0 0
        %722 = vmatpush1.bf16.msra.mxu0 0
        %723 = vmatprep.subr.bf16.mxu0 0
        %724 = vmatpush1.bf16.msra.mxu0 0
        %725 = vmatprep.mubr.bf16.mxu0 0
        %726 = vmatmul.mubr.bf16.gmra.mrb[0].mxu0 %v667
        %v727 = vpop.f32.mrb[0].mxu0
        %v728 = vadd.f32 %v564, %v727
        %v729 = vpop.f32.mrb[0].mxu0
        %v730 = vpop.f32.mrb[0].mxu0
        %v731 = vadd.f32 %v567, %v730
        %v732 = vpop.f32.mrb[0].mxu0
        %733 = vmatprep.mubr.bf16.mxu0 0
        %734 = vmatmul.mubr.bf16.gmra.mrb[0].mxu0 %v670
        %v735 = vpop.f32.mrb[0].mxu0
        %v736 = vadd.f32 %v572, %v735
        %v737 = vpop.f32.mrb[0].mxu0
        %v738 = vpop.f32.mrb[0].mxu0
        %v739 = vadd.f32 %v575, %v738
        %v740 = vpop.f32.mrb[0].mxu0
        %741 = vmatprep.mubr.bf16.mxu0 0
        %742 = vmatmul.mubr.bf16.gmra.mrb[0].mxu0 %v673
        %v743 = vpop.f32.mrb[0].mxu0
        %v744 = vadd.f32 %v580, %v743
        %v745 = vpop.f32.mrb[0].mxu0
        %v746 = vpop.f32.mrb[0].mxu0
        %v747 = vadd.f32 %v583, %v746
        %v748 = vpop.f32.mrb[0].mxu0
        %749 = vmatprep.mubr.bf16.mxu0 0
        %750 = vmatmul.mubr.bf16.gmra.mrb[0].mxu0 %v676
        %v751 = vpop.f32.mrb[0].mxu0
        %v752 = vadd.f32 %v588, %v751
        %v753 = vpop.f32.mrb[0].mxu0
        %v754 = vpop.f32.mrb[0].mxu0
        %v755 = vadd.f32 %v591, %v754
        %v756 = vpop.f32.mrb[0].mxu0
        %757 = vmatprep.mubr.bf16.mxu0 0
        %758 = vmatmul.mubr.bf16.gmra.mrb[0].mxu0 %v679
        %v759 = vpop.f32.mrb[0].mxu0
        %v760 = vadd.f32 %v596, %v759
        %v761 = vpop.f32.mrb[0].mxu0
        %v762 = vpop.f32.mrb[0].mxu0
        %v763 = vadd.f32 %v599, %v762
        %v764 = vpop.f32.mrb[0].mxu0
        %765 = vmatprep.mubr.bf16.mxu0 0
        %766 = vmatmul.mubr.bf16.gmra.mrb[0].mxu0 %v682
        %v767 = vpop.f32.mrb[0].mxu0
        %v768 = vadd.f32 %v604, %v767
        %v769 = vpop.f32.mrb[0].mxu0
        %v770 = vpop.f32.mrb[0].mxu0
        %v771 = vadd.f32 %v607, %v770
        %v772 = vpop.f32.mrb[0].mxu0
        %773 = vmatprep.mubr.bf16.mxu0 0
        %774 = vmatmul.mubr.bf16.gmra.mrb[0].mxu0 %v685
        %v775 = vpop.f32.mrb[0].mxu0
        %v776 = vadd.f32 %v612, %v775
        %v777 = vpop.f32.mrb[0].mxu0
        %v778 = vpop.f32.mrb[0].mxu0
        %v779 = vadd.f32 %v615, %v778
        %v780 = vpop.f32.mrb[0].mxu0
        %781 = vmatprep.mubr.bf16.mxu0 0
        %782 = vmatmul.mubr.bf16.gmra.mrb[0].mxu0 %v688
        %v783 = vpop.f32.mrb[0].mxu0
        %v784 = vadd.f32 %v620, %v783
        %v785 = vpop.f32.mrb[0].mxu0
        %v786 = vpop.f32.mrb[0].mxu0
        %v787 = vadd.f32 %v623, %v786
        %v788 = vpop.f32.mrb[0].mxu0
        %789 = vdwg.mxu0
        %v790 = vld [vmem:[%s247] sm:$0xe]
        %v791 = vld [vmem:[%s247 + $0xc] sm:$0xe]
        %v792 = vld [vmem:[%s247 + $0x18] sm:$0xe]
        %v793 = vld [vmem:[%s247 + $0x24] sm:$0xe]
        %v794 = vld [vmem:[%s247 + $0x30] sm:$0xe]
        %v795 = vld [vmem:[%s247 + $0x3c] sm:$0xe]
        %v796 = vld [vmem:[%s247 + $0x48] sm:$0xe]
        %v797 = vld [vmem:[%s247 + $0x54] sm:$0xe]
        %vm814 = vcmask 1042432
        %vm815 = vcmask 1046532
        %vm816 = vmor %vm814, %vm815
        %v817 = vrot.slane %v790, 5
        %v818 = vrot.slane %v817, 4
        %v819 = vrot.slane %v255, 5
        %v820 = vsel %vm816, %v818, %v819
        %v821 = vrot.slane %v819, 4
        %v822 = vrot.slane %v271, 5
        %v823 = vsel %vm816, %v821, %v822
        %v824 = vrot.slane %v791, 5
        %v825 = vrot.slane %v824, 4
        %v826 = vrot.slane %v257, 5
        %v827 = vsel %vm816, %v825, %v826
        %v828 = vrot.slane %v826, 4
        %v829 = vrot.slane %v272, 5
        %v830 = vsel %vm816, %v828, %v829
        %v831 = vrot.slane %v792, 5
        %v832 = vrot.slane %v831, 4
        %v833 = vrot.slane %v259, 5
        %v834 = vsel %vm816, %v832, %v833
        %v835 = vrot.slane %v833, 4
        %v836 = vrot.slane %v273, 5
        %v837 = vsel %vm816, %v835, %v836
        %v838 = vrot.slane %v793, 5
        %v839 = vrot.slane %v838, 4
        %v840 = vrot.slane %v261, 5
        %v841 = vsel %vm816, %v839, %v840
        %v842 = vrot.slane %v840, 4
        %v843 = vrot.slane %v274, 5
        %v844 = vsel %vm816, %v842, %v843
        %v845 = vrot.slane %v794, 5
        %v846 = vrot.slane %v845, 4
        %v847 = vrot.slane %v263, 5
        %v848 = vsel %vm816, %v846, %v847
        %v849 = vrot.slane %v847, 4
        %v850 = vrot.slane %v275, 5
        %v851 = vsel %vm816, %v849, %v850
        %v852 = vrot.slane %v795, 5
        %v853 = vrot.slane %v852, 4
        %v854 = vrot.slane %v265, 5
        %v855 = vsel %vm816, %v853, %v854
        %v856 = vrot.slane %v854, 4
        %v857 = vrot.slane %v276, 5
        %v858 = vsel %vm816, %v856, %v857
        %v859 = vrot.slane %v796, 5
        %v860 = vrot.slane %v859, 4
        %v861 = vrot.slane %v267, 5
        %v862 = vsel %vm816, %v860, %v861
        %v863 = vrot.slane %v861, 4
        %v864 = vrot.slane %v277, 5
        %v865 = vsel %vm816, %v863, %v864
        %v866 = vrot.slane %v797, 5
        %v867 = vrot.slane %v866, 4
        %v868 = vrot.slane %v269, 5
        %v869 = vsel %vm816, %v867, %v868
        %v870 = vrot.slane %v868, 4
        %v871 = vrot.slane %v278, 5
        %v872 = vsel %vm816, %v870, %v871
        %s873 = scalar_lea.vmem %s1, 4
        %v874 = vld [vmem:[%s873] sm:$0x3]
        %v875 = vunpack.c.l.b16 %v820
        %v876 = vunpack.c.l.b16 %v823
        %v877 = vunpack.c.l.b16 %v827
        %v878 = vunpack.c.l.b16 %v830
        %v879 = vunpack.c.l.b16 %v834
        %v880 = vunpack.c.l.b16 %v837
        %v881 = vunpack.c.l.b16 %v841
        %v882 = vunpack.c.l.b16 %v844
        %v883 = vunpack.c.l.b16 %v848
        %v884 = vunpack.c.l.b16 %v851
        %v885 = vunpack.c.l.b16 %v855
        %v886 = vunpack.c.l.b16 %v858
        %v887 = vunpack.c.l.b16 %v862
        %v888 = vunpack.c.l.b16 %v865
        %v889 = vunpack.c.l.b16 %v869
        %v890 = vunpack.c.l.b16 %v872
        %v891 = vpack.c.b16 %v876, %v875
        %v892 = vpack.c.b16 %v878, %v877
        %v893 = vpack.c.b16 %v880, %v879
        %v894 = vpack.c.b16 %v882, %v881
        %v895 = vpack.c.b16 %v884, %v883
        %v896 = vpack.c.b16 %v886, %v885
        %v897 = vpack.c.b16 %v888, %v887
        %v898 = vpack.c.b16 %v890, %v889
        %v900 = vsel %vm500, %v891, 0
        %v903 = vsel %vm500, %v892, 0
        %v906 = vsel %vm500, %v893, 0
        %v909 = vsel %vm500, %v894, 0
        %v912 = vsel %vm500, %v895, 0
        %v915 = vsel %vm500, %v896, 0
        %v918 = vsel %vm500, %v897, 0
        %v921 = vsel %vm500, %v898, 0
        %v924 = vsel %vm525, %v874, 0
        %926 = vmatprep.subr.bf16.mxu0 0
        %927 = vmatpush1.bf16.msra.mxu0 %v924
        %928 = vmatprep.subr.bf16.mxu0 0
        %929 = vmatpush1.bf16.msra.mxu0 0
        %930 = vmatprep.subr.bf16.mxu0 0
        %931 = vmatpush1.bf16.msra.mxu0 0
        %932 = vmatprep.subr.bf16.mxu0 0
        %933 = vmatpush1.bf16.msra.mxu0 0
        %934 = vmatprep.subr.bf16.mxu0 0
        %935 = vmatpush1.bf16.msra.mxu0 0
        %936 = vmatprep.subr.bf16.mxu0 0
        %937 = vmatpush1.bf16.msra.mxu0 0
        %938 = vmatprep.subr.bf16.mxu0 0
        %939 = vmatpush1.bf16.msra.mxu0 0
        %940 = vmatprep.subr.bf16.mxu0 0
        %941 = vmatpush1.bf16.msra.mxu0 0
        %942 = vmatprep.subr.bf16.mxu0 0
        %943 = vmatpush1.bf16.msra.mxu0 0
        %944 = vmatprep.subr.bf16.mxu0 0
        %945 = vmatpush1.bf16.msra.mxu0 0
        %946 = vmatprep.subr.bf16.mxu0 0
        %947 = vmatpush1.bf16.msra.mxu0 0
        %948 = vmatprep.subr.bf16.mxu0 0
        %949 = vmatpush1.bf16.msra.mxu0 0
        %950 = vmatprep.subr.bf16.mxu0 0
        %951 = vmatpush1.bf16.msra.mxu0 0
        %952 = vmatprep.subr.bf16.mxu0 0
        %953 = vmatpush1.bf16.msra.mxu0 0
        %954 = vmatprep.subr.bf16.mxu0 0
        %955 = vmatpush1.bf16.msra.mxu0 0
        %956 = vmatprep.subr.bf16.mxu0 0
        %957 = vmatpush1.bf16.msra.mxu0 0
        %958 = vmatprep.mubr.bf16.mxu0 0
        %959 = vmatmul.mubr.bf16.gmra.mrb[0].mxu0 %v900
        %v960 = vpop.f32.mrb[0].mxu0
        %v961 = vadd.f32 0.0, %v960
        %v962 = vpop.f32.mrb[0].mxu0
        %v963 = vpop.f32.mrb[0].mxu0
        %v964 = vadd.f32 0.0, %v963
        %v965 = vpop.f32.mrb[0].mxu0
        %966 = vmatprep.mubr.bf16.mxu0 0
        %967 = vmatmul.mubr.bf16.gmra.mrb[0].mxu0 %v903
        %v968 = vpop.f32.mrb[0].mxu0
        %v969 = vadd.f32 0.0, %v968
        %v970 = vpop.f32.mrb[0].mxu0
        %v971 = vpop.f32.mrb[0].mxu0
        %v972 = vadd.f32 0.0, %v971
        %v973 = vpop.f32.mrb[0].mxu0
        %974 = vmatprep.mubr.bf16.mxu0 0
        %975 = vmatmul.mubr.bf16.gmra.mrb[0].mxu0 %v906
        %v976 = vpop.f32.mrb[0].mxu0
        %v977 = vadd.f32 0.0, %v976
        %v978 = vpop.f32.mrb[0].mxu0
        %v979 = vpop.f32.mrb[0].mxu0
        %v980 = vadd.f32 0.0, %v979
        %v981 = vpop.f32.mrb[0].mxu0
        %982 = vmatprep.mubr.bf16.mxu0 0
        %983 = vmatmul.mubr.bf16.gmra.mrb[0].mxu0 %v909
        %v984 = vpop.f32.mrb[0].mxu0
        %v985 = vadd.f32 0.0, %v984
        %v986 = vpop.f32.mrb[0].mxu0
        %v987 = vpop.f32.mrb[0].mxu0
        %v988 = vadd.f32 0.0, %v987
        %v989 = vpop.f32.mrb[0].mxu0
        %990 = vmatprep.mubr.bf16.mxu0 0
        %991 = vmatmul.mubr.bf16.gmra.mrb[0].mxu0 %v912
        %v992 = vpop.f32.mrb[0].mxu0
        %v993 = vadd.f32 0.0, %v992
        %v994 = vpop.f32.mrb[0].mxu0
        %v995 = vpop.f32.mrb[0].mxu0
        %v996 = vadd.f32 0.0, %v995
        %v997 = vpop.f32.mrb[0].mxu0
        %998 = vmatprep.mubr.bf16.mxu0 0
        %999 = vmatmul.mubr.bf16.gmra.mrb[0].mxu0 %v915
        %v1000 = vpop.f32.mrb[0].mxu0
        %v1001 = vadd.f32 0.0, %v1000
        %v1002 = vpop.f32.mrb[0].mxu0
        %v1003 = vpop.f32.mrb[0].mxu0
        %v1004 = vadd.f32 0.0, %v1003
        %v1005 = vpop.f32.mrb[0].mxu0
        %1006 = vmatprep.mubr.bf16.mxu0 0
        %1007 = vmatmul.mubr.bf16.gmra.mrb[0].mxu0 %v918
        %v1008 = vpop.f32.mrb[0].mxu0
        %v1009 = vadd.f32 0.0, %v1008
        %v1010 = vpop.f32.mrb[0].mxu0
        %v1011 = vpop.f32.mrb[0].mxu0
        %v1012 = vadd.f32 0.0, %v1011
        %v1013 = vpop.f32.mrb[0].mxu0
        %1014 = vmatprep.mubr.bf16.mxu0 0
        %1015 = vmatmul.mubr.bf16.gmra.mrb[0].mxu0 %v921
        %v1016 = vpop.f32.mrb[0].mxu0
        %v1017 = vadd.f32 0.0, %v1016
        %v1018 = vpop.f32.mrb[0].mxu0
        %v1019 = vpop.f32.mrb[0].mxu0
        %v1020 = vadd.f32 0.0, %v1019
        %v1021 = vpop.f32.mrb[0].mxu0
        %1022 = vdwg.mxu0
        %v1023 = vadd.f32 %v728, %v961
        %v1024 = vadd.f32 %v731, %v964
        %v1025 = vadd.f32 %v736, %v969
        %v1026 = vadd.f32 %v739, %v972
        %v1027 = vadd.f32 %v744, %v977
        %v1028 = vadd.f32 %v747, %v980
        %v1029 = vadd.f32 %v752, %v985
        %v1030 = vadd.f32 %v755, %v988
        %v1031 = vadd.f32 %v760, %v993
        %v1032 = vadd.f32 %v763, %v996
        %v1033 = vadd.f32 %v768, %v1001
        %v1034 = vadd.f32 %v771, %v1004
        %v1035 = vadd.f32 %v776, %v1009
        %v1036 = vadd.f32 %v779, %v1012
        %v1037 = vadd.f32 %v784, %v1017
        %v1038 = vadd.f32 %v787, %v1020
        %s1039 = scalar_lea.vmem %s247, 12
        %v1040 = vld [vmem:[%s1039] sm:$0xf]
        %v1041 = vld [vmem:[%s1039 + $0x4] sm:$0xf]
        %v1042 = vld [vmem:[%s1039 + $0xc] sm:$0xf]
        %v1043 = vld [vmem:[%s1039 + $0x10] sm:$0xf]
        %v1044 = vld [vmem:[%s1039 + $0x18] sm:$0xf]
        %v1045 = vld [vmem:[%s1039 + $0x1c] sm:$0xf]
        %v1046 = vld [vmem:[%s1039 + $0x24] sm:$0xf]
        %v1047 = vld [vmem:[%s1039 + $0x28] sm:$0xf]
        %v1048 = vld [vmem:[%s1039 + $0x30] sm:$0xf]
        %v1049 = vld [vmem:[%s1039 + $0x34] sm:$0xf]
        %v1050 = vld [vmem:[%s1039 + $0x3c] sm:$0xf]
        %v1051 = vld [vmem:[%s1039 + $0x40] sm:$0xf]
        %v1052 = vld [vmem:[%s1039 + $0x48] sm:$0xf]
        %v1053 = vld [vmem:[%s1039 + $0x4c] sm:$0xf]
        %v1054 = vld [vmem:[%s1039 + $0x54] sm:$0xf]
        %v1055 = vld [vmem:[%s1039 + $0x58] sm:$0xf]
        %s1056 = scalar_lea.vmem %s1, 6
        %v1057 = vld [vmem:[%s1056] sm:$0x3]
        %v1074 = vunpack.c.l.b16 %v1040
        %v1075 = vunpack.c.l.b16 %v1041
        %v1076 = vunpack.c.l.b16 %v1042
        %v1077 = vunpack.c.l.b16 %v1043
        %v1078 = vunpack.c.l.b16 %v1044
        %v1079 = vunpack.c.l.b16 %v1045
        %v1080 = vunpack.c.l.b16 %v1046
        %v1081 = vunpack.c.l.b16 %v1047
        %v1082 = vunpack.c.l.b16 %v1048
        %v1083 = vunpack.c.l.b16 %v1049
        %v1084 = vunpack.c.l.b16 %v1050
        %v1085 = vunpack.c.l.b16 %v1051
        %v1086 = vunpack.c.l.b16 %v1052
        %v1087 = vunpack.c.l.b16 %v1053
        %v1088 = vunpack.c.l.b16 %v1054
        %v1089 = vunpack.c.l.b16 %v1055
        %v1090 = vpack.c.b16 %v1075, %v1074
        %v1091 = vpack.c.b16 %v1077, %v1076
        %v1092 = vpack.c.b16 %v1079, %v1078
        %v1093 = vpack.c.b16 %v1081, %v1080
        %v1094 = vpack.c.b16 %v1083, %v1082
        %v1095 = vpack.c.b16 %v1085, %v1084
        %v1096 = vpack.c.b16 %v1087, %v1086
        %v1097 = vpack.c.b16 %v1089, %v1088
        %v1099 = vsel %vm500, %v1090, 0
        %v1102 = vsel %vm500, %v1091, 0
        %v1105 = vsel %vm500, %v1092, 0
        %v1108 = vsel %vm500, %v1093, 0
        %v1111 = vsel %vm500, %v1094, 0
        %v1114 = vsel %vm500, %v1095, 0
        %v1117 = vsel %vm500, %v1096, 0
        %v1120 = vsel %vm500, %v1097, 0
        %v1123 = vsel %vm525, %v1057, 0
        %1125 = vmatprep.subr.bf16.mxu0 0
        %1126 = vmatpush1.bf16.msra.mxu0 %v1123
        %1127 = vmatprep.subr.bf16.mxu0 0
        %1128 = vmatpush1.bf16.msra.mxu0 0
        %1129 = vmatprep.subr.bf16.mxu0 0
        %1130 = vmatpush1.bf16.msra.mxu0 0
        %1131 = vmatprep.subr.bf16.mxu0 0
        %1132 = vmatpush1.bf16.msra.mxu0 0
        %1133 = vmatprep.subr.bf16.mxu0 0
        %1134 = vmatpush1.bf16.msra.mxu0 0
        %1135 = vmatprep.subr.bf16.mxu0 0
        %1136 = vmatpush1.bf16.msra.mxu0 0
        %1137 = vmatprep.subr.bf16.mxu0 0
        %1138 = vmatpush1.bf16.msra.mxu0 0
        %1139 = vmatprep.subr.bf16.mxu0 0
        %1140 = vmatpush1.bf16.msra.mxu0 0
        %1141 = vmatprep.subr.bf16.mxu0 0
        %1142 = vmatpush1.bf16.msra.mxu0 0
        %1143 = vmatprep.subr.bf16.mxu0 0
        %1144 = vmatpush1.bf16.msra.mxu0 0
        %1145 = vmatprep.subr.bf16.mxu0 0
        %1146 = vmatpush1.bf16.msra.mxu0 0
        %1147 = vmatprep.subr.bf16.mxu0 0
        %1148 = vmatpush1.bf16.msra.mxu0 0
        %1149 = vmatprep.subr.bf16.mxu0 0
        %1150 = vmatpush1.bf16.msra.mxu0 0
        %1151 = vmatprep.subr.bf16.mxu0 0
        %1152 = vmatpush1.bf16.msra.mxu0 0
        %1153 = vmatprep.subr.bf16.mxu0 0
        %1154 = vmatpush1.bf16.msra.mxu0 0
        %1155 = vmatprep.subr.bf16.mxu0 0
        %1156 = vmatpush1.bf16.msra.mxu0 0
        %1157 = vmatprep.mubr.bf16.mxu0 0
        %1158 = vmatmul.mubr.bf16.gmra.mrb[0].mxu0 %v1099
        %v1159 = vpop.f32.mrb[0].mxu0
        %v1160 = vadd.f32 0.0, %v1159
        %v1161 = vpop.f32.mrb[0].mxu0
        %v1162 = vpop.f32.mrb[0].mxu0
        %v1163 = vadd.f32 0.0, %v1162
        %v1164 = vpop.f32.mrb[0].mxu0
        %1165 = vmatprep.mubr.bf16.mxu0 0
        %1166 = vmatmul.mubr.bf16.gmra.mrb[0].mxu0 %v1102
        %v1167 = vpop.f32.mrb[0].mxu0
        %v1168 = vadd.f32 0.0, %v1167
        %v1169 = vpop.f32.mrb[0].mxu0
        %v1170 = vpop.f32.mrb[0].mxu0
        %v1171 = vadd.f32 0.0, %v1170
        %v1172 = vpop.f32.mrb[0].mxu0
        %1173 = vmatprep.mubr.bf16.mxu0 0
        %1174 = vmatmul.mubr.bf16.gmra.mrb[0].mxu0 %v1105
        %v1175 = vpop.f32.mrb[0].mxu0
        %v1176 = vadd.f32 0.0, %v1175
        %v1177 = vpop.f32.mrb[0].mxu0
        %v1178 = vpop.f32.mrb[0].mxu0
        %v1179 = vadd.f32 0.0, %v1178
        %v1180 = vpop.f32.mrb[0].mxu0
        %1181 = vmatprep.mubr.bf16.mxu0 0
        %1182 = vmatmul.mubr.bf16.gmra.mrb[0].mxu0 %v1108
        %v1183 = vpop.f32.mrb[0].mxu0
        %v1184 = vadd.f32 0.0, %v1183
        %v1185 = vpop.f32.mrb[0].mxu0
        %v1186 = vpop.f32.mrb[0].mxu0
        %v1187 = vadd.f32 0.0, %v1186
        %v1188 = vpop.f32.mrb[0].mxu0
        %1189 = vmatprep.mubr.bf16.mxu0 0
        %1190 = vmatmul.mubr.bf16.gmra.mrb[0].mxu0 %v1111
        %v1191 = vpop.f32.mrb[0].mxu0
        %v1192 = vadd.f32 0.0, %v1191
        %v1193 = vpop.f32.mrb[0].mxu0
        %v1194 = vpop.f32.mrb[0].mxu0
        %v1195 = vadd.f32 0.0, %v1194
        %v1196 = vpop.f32.mrb[0].mxu0
        %1197 = vmatprep.mubr.bf16.mxu0 0
        %1198 = vmatmul.mubr.bf16.gmra.mrb[0].mxu0 %v1114
        %v1199 = vpop.f32.mrb[0].mxu0
        %v1200 = vadd.f32 0.0, %v1199
        %v1201 = vpop.f32.mrb[0].mxu0
        %v1202 = vpop.f32.mrb[0].mxu0
        %v1203 = vadd.f32 0.0, %v1202
        %v1204 = vpop.f32.mrb[0].mxu0
        %1205 = vmatprep.mubr.bf16.mxu0 0
        %1206 = vmatmul.mubr.bf16.gmra.mrb[0].mxu0 %v1117
        %v1207 = vpop.f32.mrb[0].mxu0
        %v1208 = vadd.f32 0.0, %v1207
        %v1209 = vpop.f32.mrb[0].mxu0
        %v1210 = vpop.f32.mrb[0].mxu0
        %v1211 = vadd.f32 0.0, %v1210
        %v1212 = vpop.f32.mrb[0].mxu0
        %1213 = vmatprep.mubr.bf16.mxu0 0
        %1214 = vmatmul.mubr.bf16.gmra.mrb[0].mxu0 %v1120
        %v1215 = vpop.f32.mrb[0].mxu0
        %v1216 = vadd.f32 0.0, %v1215
        %v1217 = vpop.f32.mrb[0].mxu0
        %v1218 = vpop.f32.mrb[0].mxu0
        %v1219 = vadd.f32 0.0, %v1218
        %v1220 = vpop.f32.mrb[0].mxu0
        %1221 = vdwg.mxu0
        %v1222 = vadd.f32 %v1023, %v1160
        %v1223 = vadd.f32 %v1024, %v1163
        %v1224 = vadd.f32 %v1025, %v1168
        %v1225 = vadd.f32 %v1026, %v1171
        %v1226 = vadd.f32 %v1027, %v1176
        %v1227 = vadd.f32 %v1028, %v1179
        %v1228 = vadd.f32 %v1029, %v1184
        %v1229 = vadd.f32 %v1030, %v1187
        %v1230 = vadd.f32 %v1031, %v1192
        %v1231 = vadd.f32 %v1032, %v1195
        %v1232 = vadd.f32 %v1033, %v1200
        %v1233 = vadd.f32 %v1034, %v1203
        %v1234 = vadd.f32 %v1035, %v1208
        %v1235 = vadd.f32 %v1036, %v1211
        %v1236 = vadd.f32 %v1037, %v1216
        %v1237 = vadd.f32 %v1038, %v1219
        %v1238 = vld [vmem:[%s1039] sm:$0xf]
        %v1239 = vld [vmem:[%s1039 + $0x4] sm:$0xf]
        %v1240 = vld [vmem:[%s1039 + $0x8] sm:$0x1]
        %v1241 = vld [vmem:[%s1039 + $0xc] sm:$0xf]
        %v1242 = vld [vmem:[%s1039 + $0x10] sm:$0xf]
        %v1243 = vld [vmem:[%s1039 + $0x14] sm:$0x1]
        %v1244 = vld [vmem:[%s1039 + $0x18] sm:$0xf]
        %v1245 = vld [vmem:[%s1039 + $0x1c] sm:$0xf]
        %v1246 = vld [vmem:[%s1039 + $0x20] sm:$0x1]
        %v1247 = vld [vmem:[%s1039 + $0x24] sm:$0xf]
        %v1248 = vld [vmem:[%s1039 + $0x28] sm:$0xf]
        %v1249 = vld [vmem:[%s1039 + $0x2c] sm:$0x1]
        %v1250 = vld [vmem:[%s1039 + $0x30] sm:$0xf]
        %v1251 = vld [vmem:[%s1039 + $0x34] sm:$0xf]
        %v1252 = vld [vmem:[%s1039 + $0x38] sm:$0x1]
        %v1253 = vld [vmem:[%s1039 + $0x3c] sm:$0xf]
        %v1254 = vld [vmem:[%s1039 + $0x40] sm:$0xf]
        %v1255 = vld [vmem:[%s1039 + $0x44] sm:$0x1]
        %v1256 = vld [vmem:[%s1039 + $0x48] sm:$0xf]
        %v1257 = vld [vmem:[%s1039 + $0x4c] sm:$0xf]
        %v1258 = vld [vmem:[%s1039 + $0x50] sm:$0x1]
        %v1259 = vld [vmem:[%s1039 + $0x54] sm:$0xf]
        %v1260 = vld [vmem:[%s1039 + $0x58] sm:$0xf]
        %v1261 = vld [vmem:[%s1039 + $0x5c] sm:$0x1]
        %v1263 = vshrl.u32 %v1238, 16
        %v1265 = vrot.slane %v1263, 4
        %v1266 = vshll.u32 %v1238, 16
        %v1268 = vrot.slane %v1266, 5
        %v1269 = vor.u32 %v1265, %v1268
        %v1270 = vrot.slane %v1269, 4
        %v1272 = vshll.u32 %v1239, 16
        %v1274 = vrot.slane %v1272, 5
        %v1275 = vsel %vm281, %v1270, %v1274
        %v1276 = vshrl.u32 %v1239, 16
        %v1278 = vrot.slane %v1276, 4
        %v1279 = vor.u32 %v1278, %v1274
        %v1280 = vrot.slane %v1279, 4
        %v1282 = vshll.u32 %v1240, 16
        %v1284 = vrot.slane %v1282, 5
        %v1285 = vsel %vm281, %v1280, %v1284
        %v1287 = vshrl.u32 %v1241, 16
        %v1289 = vrot.slane %v1287, 4
        %v1290 = vshll.u32 %v1241, 16
        %v1292 = vrot.slane %v1290, 5
        %v1293 = vor.u32 %v1289, %v1292
        %v1294 = vrot.slane %v1293, 4
        %v1296 = vshll.u32 %v1242, 16
        %v1298 = vrot.slane %v1296, 5
        %v1299 = vsel %vm281, %v1294, %v1298
        %v1300 = vshrl.u32 %v1242, 16
        %v1302 = vrot.slane %v1300, 4
        %v1303 = vor.u32 %v1302, %v1298
        %v1304 = vrot.slane %v1303, 4
        %v1306 = vshll.u32 %v1243, 16
        %v1308 = vrot.slane %v1306, 5
        %v1309 = vsel %vm281, %v1304, %v1308
        %v1311 = vshrl.u32 %v1244, 16
        %v1313 = vrot.slane %v1311, 4
        %v1314 = vshll.u32 %v1244, 16
        %v1316 = vrot.slane %v1314, 5
        %v1317 = vor.u32 %v1313, %v1316
        %v1318 = vrot.slane %v1317, 4
        %v1320 = vshll.u32 %v1245, 16
        %v1322 = vrot.slane %v1320, 5
        %v1323 = vsel %vm281, %v1318, %v1322
        %v1324 = vshrl.u32 %v1245, 16
        %v1326 = vrot.slane %v1324, 4
        %v1327 = vor.u32 %v1326, %v1322
        %v1328 = vrot.slane %v1327, 4
        %v1330 = vshll.u32 %v1246, 16
        %v1332 = vrot.slane %v1330, 5
        %v1333 = vsel %vm281, %v1328, %v1332
        %v1335 = vshrl.u32 %v1247, 16
        %v1337 = vrot.slane %v1335, 4
        %v1338 = vshll.u32 %v1247, 16
        %v1340 = vrot.slane %v1338, 5
        %v1341 = vor.u32 %v1337, %v1340
        %v1342 = vrot.slane %v1341, 4
        %v1344 = vshll.u32 %v1248, 16
        %v1346 = vrot.slane %v1344, 5
        %v1347 = vsel %vm281, %v1342, %v1346
        %v1348 = vshrl.u32 %v1248, 16
        %v1350 = vrot.slane %v1348, 4
        %v1351 = vor.u32 %v1350, %v1346
        %v1352 = vrot.slane %v1351, 4
        %v1354 = vshll.u32 %v1249, 16
        %v1356 = vrot.slane %v1354, 5
        %v1357 = vsel %vm281, %v1352, %v1356
        %v1359 = vshrl.u32 %v1250, 16
        %v1361 = vrot.slane %v1359, 4
        %v1362 = vshll.u32 %v1250, 16
        %v1364 = vrot.slane %v1362, 5
        %v1365 = vor.u32 %v1361, %v1364
        %v1366 = vrot.slane %v1365, 4
        %v1368 = vshll.u32 %v1251, 16
        %v1370 = vrot.slane %v1368, 5
        %v1371 = vsel %vm281, %v1366, %v1370
        %v1372 = vshrl.u32 %v1251, 16
        %v1374 = vrot.slane %v1372, 4
        %v1375 = vor.u32 %v1374, %v1370
        %v1376 = vrot.slane %v1375, 4
        %v1378 = vshll.u32 %v1252, 16
        %v1380 = vrot.slane %v1378, 5
        %v1381 = vsel %vm281, %v1376, %v1380
        %v1383 = vshrl.u32 %v1253, 16
        %v1385 = vrot.slane %v1383, 4
        %v1386 = vshll.u32 %v1253, 16
        %v1388 = vrot.slane %v1386, 5
        %v1389 = vor.u32 %v1385, %v1388
        %v1390 = vrot.slane %v1389, 4
        %v1392 = vshll.u32 %v1254, 16
        %v1394 = vrot.slane %v1392, 5
        %v1395 = vsel %vm281, %v1390, %v1394
        %v1396 = vshrl.u32 %v1254, 16
        %v1398 = vrot.slane %v1396, 4
        %v1399 = vor.u32 %v1398, %v1394
        %v1400 = vrot.slane %v1399, 4
        %v1402 = vshll.u32 %v1255, 16
        %v1404 = vrot.slane %v1402, 5
        %v1405 = vsel %vm281, %v1400, %v1404
        %v1407 = vshrl.u32 %v1256, 16
        %v1409 = vrot.slane %v1407, 4
        %v1410 = vshll.u32 %v1256, 16
        %v1412 = vrot.slane %v1410, 5
        %v1413 = vor.u32 %v1409, %v1412
        %v1414 = vrot.slane %v1413, 4
        %v1416 = vshll.u32 %v1257, 16
        %v1418 = vrot.slane %v1416, 5
        %v1419 = vsel %vm281, %v1414, %v1418
        %v1420 = vshrl.u32 %v1257, 16
        %v1422 = vrot.slane %v1420, 4
        %v1423 = vor.u32 %v1422, %v1418
        %v1424 = vrot.slane %v1423, 4
        %v1426 = vshll.u32 %v1258, 16
        %v1428 = vrot.slane %v1426, 5
        %v1429 = vsel %vm281, %v1424, %v1428
        %v1431 = vshrl.u32 %v1259, 16
        %v1433 = vrot.slane %v1431, 4
        %v1434 = vshll.u32 %v1259, 16
        %v1436 = vrot.slane %v1434, 5
        %v1437 = vor.u32 %v1433, %v1436
        %v1438 = vrot.slane %v1437, 4
        %v1440 = vshll.u32 %v1260, 16
        %v1442 = vrot.slane %v1440, 5
        %v1443 = vsel %vm281, %v1438, %v1442
        %v1444 = vshrl.u32 %v1260, 16
        %v1446 = vrot.slane %v1444, 4
        %v1447 = vor.u32 %v1446, %v1442
        %v1448 = vrot.slane %v1447, 4
        %v1450 = vshll.u32 %v1261, 16
        %v1452 = vrot.slane %v1450, 5
        %v1453 = vsel %vm281, %v1448, %v1452
        %s1454 = scalar_lea.vmem %s1, 8
        %v1455 = vld [vmem:[%s1454] sm:$0x3]
        %v1456 = vunpack.c.l.b16 %v1275
        %v1457 = vunpack.c.l.b16 %v1285
        %v1458 = vunpack.c.l.b16 %v1299
        %v1459 = vunpack.c.l.b16 %v1309
        %v1460 = vunpack.c.l.b16 %v1323
        %v1461 = vunpack.c.l.b16 %v1333
        %v1462 = vunpack.c.l.b16 %v1347
        %v1463 = vunpack.c.l.b16 %v1357
        %v1464 = vunpack.c.l.b16 %v1371
        %v1465 = vunpack.c.l.b16 %v1381
        %v1466 = vunpack.c.l.b16 %v1395
        %v1467 = vunpack.c.l.b16 %v1405
        %v1468 = vunpack.c.l.b16 %v1419
        %v1469 = vunpack.c.l.b16 %v1429
        %v1470 = vunpack.c.l.b16 %v1443
        %v1471 = vunpack.c.l.b16 %v1453
        %v1472 = vpack.c.b16 %v1457, %v1456
        %v1473 = vpack.c.b16 %v1459, %v1458
        %v1474 = vpack.c.b16 %v1461, %v1460
        %v1475 = vpack.c.b16 %v1463, %v1462
        %v1476 = vpack.c.b16 %v1465, %v1464
        %v1477 = vpack.c.b16 %v1467, %v1466
        %v1478 = vpack.c.b16 %v1469, %v1468
        %v1479 = vpack.c.b16 %v1471, %v1470
        %v1481 = vsel %vm500, %v1472, 0
        %v1484 = vsel %vm500, %v1473, 0
        %v1487 = vsel %vm500, %v1474, 0
        %v1490 = vsel %vm500, %v1475, 0
        %v1493 = vsel %vm500, %v1476, 0
        %v1496 = vsel %vm500, %v1477, 0
        %v1499 = vsel %vm500, %v1478, 0
        %v1502 = vsel %vm500, %v1479, 0
        %v1505 = vsel %vm525, %v1455, 0
        %1507 = vmatprep.subr.bf16.mxu0 0
        %1508 = vmatpush1.bf16.msra.mxu0 %v1505
        %1509 = vmatprep.subr.bf16.mxu0 0
        %1510 = vmatpush1.bf16.msra.mxu0 0
        %1511 = vmatprep.subr.bf16.mxu0 0
        %1512 = vmatpush1.bf16.msra.mxu0 0
        %1513 = vmatprep.subr.bf16.mxu0 0
        %1514 = vmatpush1.bf16.msra.mxu0 0
        %1515 = vmatprep.subr.bf16.mxu0 0
        %1516 = vmatpush1.bf16.msra.mxu0 0
        %1517 = vmatprep.subr.bf16.mxu0 0
        %1518 = vmatpush1.bf16.msra.mxu0 0
        %1519 = vmatprep.subr.bf16.mxu0 0
        %1520 = vmatpush1.bf16.msra.mxu0 0
        %1521 = vmatprep.subr.bf16.mxu0 0
        %1522 = vmatpush1.bf16.msra.mxu0 0
        %1523 = vmatprep.subr.bf16.mxu0 0
        %1524 = vmatpush1.bf16.msra.mxu0 0
        %1525 = vmatprep.subr.bf16.mxu0 0
        %1526 = vmatpush1.bf16.msra.mxu0 0
        %1527 = vmatprep.subr.bf16.mxu0 0
        %1528 = vmatpush1.bf16.msra.mxu0 0
        %1529 = vmatprep.subr.bf16.mxu0 0
        %1530 = vmatpush1.bf16.msra.mxu0 0
        %1531 = vmatprep.subr.bf16.mxu0 0
        %1532 = vmatpush1.bf16.msra.mxu0 0
        %1533 = vmatprep.subr.bf16.mxu0 0
        %1534 = vmatpush1.bf16.msra.mxu0 0
        %1535 = vmatprep.subr.bf16.mxu0 0
        %1536 = vmatpush1.bf16.msra.mxu0 0
        %1537 = vmatprep.subr.bf16.mxu0 0
        %1538 = vmatpush1.bf16.msra.mxu0 0
        %1539 = vmatprep.mubr.bf16.mxu0 0
        %1540 = vmatmul.mubr.bf16.gmra.mrb[0].mxu0 %v1481
        %v1541 = vpop.f32.mrb[0].mxu0
        %v1542 = vadd.f32 0.0, %v1541
        %v1543 = vpop.f32.mrb[0].mxu0
        %v1544 = vpop.f32.mrb[0].mxu0
        %v1545 = vadd.f32 0.0, %v1544
        %v1546 = vpop.f32.mrb[0].mxu0
        %1547 = vmatprep.mubr.bf16.mxu0 0
        %1548 = vmatmul.mubr.bf16.gmra.mrb[0].mxu0 %v1484
        %v1549 = vpop.f32.mrb[0].mxu0
        %v1550 = vadd.f32 0.0, %v1549
        %v1551 = vpop.f32.mrb[0].mxu0
        %v1552 = vpop.f32.mrb[0].mxu0
        %v1553 = vadd.f32 0.0, %v1552
        %v1554 = vpop.f32.mrb[0].mxu0
        %1555 = vmatprep.mubr.bf16.mxu0 0
        %1556 = vmatmul.mubr.bf16.gmra.mrb[0].mxu0 %v1487
        %v1557 = vpop.f32.mrb[0].mxu0
        %v1558 = vadd.f32 0.0, %v1557
        %v1559 = vpop.f32.mrb[0].mxu0
        %v1560 = vpop.f32.mrb[0].mxu0
        %v1561 = vadd.f32 0.0, %v1560
        %v1562 = vpop.f32.mrb[0].mxu0
        %1563 = vmatprep.mubr.bf16.mxu0 0
        %1564 = vmatmul.mubr.bf16.gmra.mrb[0].mxu0 %v1490
        %v1565 = vpop.f32.mrb[0].mxu0
        %v1566 = vadd.f32 0.0, %v1565
        %v1567 = vpop.f32.mrb[0].mxu0
        %v1568 = vpop.f32.mrb[0].mxu0
        %v1569 = vadd.f32 0.0, %v1568
        %v1570 = vpop.f32.mrb[0].mxu0
        %1571 = vmatprep.mubr.bf16.mxu0 0
        %1572 = vmatmul.mubr.bf16.gmra.mrb[0].mxu0 %v1493
        %v1573 = vpop.f32.mrb[0].mxu0
        %v1574 = vadd.f32 0.0, %v1573
        %v1575 = vpop.f32.mrb[0].mxu0
        %v1576 = vpop.f32.mrb[0].mxu0
        %v1577 = vadd.f32 0.0, %v1576
        %v1578 = vpop.f32.mrb[0].mxu0
        %1579 = vmatprep.mubr.bf16.mxu0 0
        %1580 = vmatmul.mubr.bf16.gmra.mrb[0].mxu0 %v1496
        %v1581 = vpop.f32.mrb[0].mxu0
        %v1582 = vadd.f32 0.0, %v1581
        %v1583 = vpop.f32.mrb[0].mxu0
        %v1584 = vpop.f32.mrb[0].mxu0
        %v1585 = vadd.f32 0.0, %v1584
        %v1586 = vpop.f32.mrb[0].mxu0
        %1587 = vmatprep.mubr.bf16.mxu0 0
        %1588 = vmatmul.mubr.bf16.gmra.mrb[0].mxu0 %v1499
        %v1589 = vpop.f32.mrb[0].mxu0
        %v1590 = vadd.f32 0.0, %v1589
        %v1591 = vpop.f32.mrb[0].mxu0
        %v1592 = vpop.f32.mrb[0].mxu0
        %v1593 = vadd.f32 0.0, %v1592
        %v1594 = vpop.f32.mrb[0].mxu0
        %1595 = vmatprep.mubr.bf16.mxu0 0
        %1596 = vmatmul.mubr.bf16.gmra.mrb[0].mxu0 %v1502
        %v1597 = vpop.f32.mrb[0].mxu0
        %v1598 = vadd.f32 0.0, %v1597
        %v1599 = vpop.f32.mrb[0].mxu0
        %v1600 = vpop.f32.mrb[0].mxu0
        %v1601 = vadd.f32 0.0, %v1600
        %v1602 = vpop.f32.mrb[0].mxu0
        %1603 = vdwg.mxu0
        %v1604 = vadd.f32 %v1222, %v1542
        %v1605 = vadd.f32 %v1223, %v1545
        %v1606 = vadd.f32 %v1224, %v1550
        %v1607 = vadd.f32 %v1225, %v1553
        %v1608 = vadd.f32 %v1226, %v1558
        %v1609 = vadd.f32 %v1227, %v1561
        %v1610 = vadd.f32 %v1228, %v1566
        %v1611 = vadd.f32 %v1229, %v1569
        %v1612 = vadd.f32 %v1230, %v1574
        %v1613 = vadd.f32 %v1231, %v1577
        %v1614 = vadd.f32 %v1232, %v1582
        %v1615 = vadd.f32 %v1233, %v1585
        %v1616 = vadd.f32 %v1234, %v1590
        %v1617 = vadd.f32 %v1235, %v1593
        %v1618 = vadd.f32 %v1236, %v1598
        %v1619 = vadd.f32 %v1237, %v1601
        %v1620 = vld [vmem:[%s1039] sm:$0xe]
        %v1621 = vld [vmem:[%s1039 + $0xc] sm:$0xe]
        %v1622 = vld [vmem:[%s1039 + $0x18] sm:$0xe]
        %v1623 = vld [vmem:[%s1039 + $0x24] sm:$0xe]
        %v1624 = vld [vmem:[%s1039 + $0x30] sm:$0xe]
        %v1625 = vld [vmem:[%s1039 + $0x3c] sm:$0xe]
        %v1626 = vld [vmem:[%s1039 + $0x48] sm:$0xe]
        %v1627 = vld [vmem:[%s1039 + $0x54] sm:$0xe]
        %v1652 = vrot.slane %v1620, 5
        %v1653 = vrot.slane %v1652, 4
        %v1654 = vrot.slane %v1239, 5
        %v1655 = vsel %vm816, %v1653, %v1654
        %v1656 = vrot.slane %v1654, 4
        %v1657 = vrot.slane %v1240, 5
        %v1658 = vsel %vm816, %v1656, %v1657
        %v1659 = vrot.slane %v1621, 5
        %v1660 = vrot.slane %v1659, 4
        %v1661 = vrot.slane %v1242, 5
        %v1662 = vsel %vm816, %v1660, %v1661
        %v1663 = vrot.slane %v1661, 4
        %v1664 = vrot.slane %v1243, 5
        %v1665 = vsel %vm816, %v1663, %v1664
        %v1666 = vrot.slane %v1622, 5
        %v1667 = vrot.slane %v1666, 4
        %v1668 = vrot.slane %v1245, 5
        %v1669 = vsel %vm816, %v1667, %v1668
        %v1670 = vrot.slane %v1668, 4
        %v1671 = vrot.slane %v1246, 5
        %v1672 = vsel %vm816, %v1670, %v1671
        %v1673 = vrot.slane %v1623, 5
        %v1674 = vrot.slane %v1673, 4
        %v1675 = vrot.slane %v1248, 5
        %v1676 = vsel %vm816, %v1674, %v1675
        %v1677 = vrot.slane %v1675, 4
        %v1678 = vrot.slane %v1249, 5
        %v1679 = vsel %vm816, %v1677, %v1678
        %v1680 = vrot.slane %v1624, 5
        %v1681 = vrot.slane %v1680, 4
        %v1682 = vrot.slane %v1251, 5
        %v1683 = vsel %vm816, %v1681, %v1682
        %v1684 = vrot.slane %v1682, 4
        %v1685 = vrot.slane %v1252, 5
        %v1686 = vsel %vm816, %v1684, %v1685
        %v1687 = vrot.slane %v1625, 5
        %v1688 = vrot.slane %v1687, 4
        %v1689 = vrot.slane %v1254, 5
        %v1690 = vsel %vm816, %v1688, %v1689
        %v1691 = vrot.slane %v1689, 4
        %v1692 = vrot.slane %v1255, 5
        %v1693 = vsel %vm816, %v1691, %v1692
        %v1694 = vrot.slane %v1626, 5
        %v1695 = vrot.slane %v1694, 4
        %v1696 = vrot.slane %v1257, 5
        %v1697 = vsel %vm816, %v1695, %v1696
        %v1698 = vrot.slane %v1696, 4
        %v1699 = vrot.slane %v1258, 5
        %v1700 = vsel %vm816, %v1698, %v1699
        %v1701 = vrot.slane %v1627, 5
        %v1702 = vrot.slane %v1701, 4
        %v1703 = vrot.slane %v1260, 5
        %v1704 = vsel %vm816, %v1702, %v1703
        %v1705 = vrot.slane %v1703, 4
        %v1706 = vrot.slane %v1261, 5
        %v1707 = vsel %vm816, %v1705, %v1706
        %s1708 = scalar_lea.vmem %s1, 10
        %v1709 = vld [vmem:[%s1708] sm:$0x3]
        %v1710 = vunpack.c.l.b16 %v1655
        %v1711 = vunpack.c.l.b16 %v1658
        %v1712 = vunpack.c.l.b16 %v1662
        %v1713 = vunpack.c.l.b16 %v1665
        %v1714 = vunpack.c.l.b16 %v1669
        %v1715 = vunpack.c.l.b16 %v1672
        %v1716 = vunpack.c.l.b16 %v1676
        %v1717 = vunpack.c.l.b16 %v1679
        %v1718 = vunpack.c.l.b16 %v1683
        %v1719 = vunpack.c.l.b16 %v1686
        %v1720 = vunpack.c.l.b16 %v1690
        %v1721 = vunpack.c.l.b16 %v1693
        %v1722 = vunpack.c.l.b16 %v1697
        %v1723 = vunpack.c.l.b16 %v1700
        %v1724 = vunpack.c.l.b16 %v1704
        %v1725 = vunpack.c.l.b16 %v1707
        %v1726 = vpack.c.b16 %v1711, %v1710
        %v1727 = vpack.c.b16 %v1713, %v1712
        %v1728 = vpack.c.b16 %v1715, %v1714
        %v1729 = vpack.c.b16 %v1717, %v1716
        %v1730 = vpack.c.b16 %v1719, %v1718
        %v1731 = vpack.c.b16 %v1721, %v1720
        %v1732 = vpack.c.b16 %v1723, %v1722
        %v1733 = vpack.c.b16 %v1725, %v1724
        %v1735 = vsel %vm500, %v1726, 0
        %v1738 = vsel %vm500, %v1727, 0
        %v1741 = vsel %vm500, %v1728, 0
        %v1744 = vsel %vm500, %v1729, 0
        %v1747 = vsel %vm500, %v1730, 0
        %v1750 = vsel %vm500, %v1731, 0
        %v1753 = vsel %vm500, %v1732, 0
        %v1756 = vsel %vm500, %v1733, 0
        %v1759 = vsel %vm525, %v1709, 0
        %1761 = vmatprep.subr.bf16.mxu0 0
        %1762 = vmatpush1.bf16.msra.mxu0 %v1759
        %1763 = vmatprep.subr.bf16.mxu0 0
        %1764 = vmatpush1.bf16.msra.mxu0 0
        %1765 = vmatprep.subr.bf16.mxu0 0
        %1766 = vmatpush1.bf16.msra.mxu0 0
        %1767 = vmatprep.subr.bf16.mxu0 0
        %1768 = vmatpush1.bf16.msra.mxu0 0
        %1769 = vmatprep.subr.bf16.mxu0 0
        %1770 = vmatpush1.bf16.msra.mxu0 0
        %1771 = vmatprep.subr.bf16.mxu0 0
        %1772 = vmatpush1.bf16.msra.mxu0 0
        %1773 = vmatprep.subr.bf16.mxu0 0
        %1774 = vmatpush1.bf16.msra.mxu0 0
        %1775 = vmatprep.subr.bf16.mxu0 0
        %1776 = vmatpush1.bf16.msra.mxu0 0
        %1777 = vmatprep.subr.bf16.mxu0 0
        %1778 = vmatpush1.bf16.msra.mxu0 0
        %1779 = vmatprep.subr.bf16.mxu0 0
        %1780 = vmatpush1.bf16.msra.mxu0 0
        %1781 = vmatprep.subr.bf16.mxu0 0
        %1782 = vmatpush1.bf16.msra.mxu0 0
        %1783 = vmatprep.subr.bf16.mxu0 0
        %1784 = vmatpush1.bf16.msra.mxu0 0
        %1785 = vmatprep.subr.bf16.mxu0 0
        %1786 = vmatpush1.bf16.msra.mxu0 0
        %1787 = vmatprep.subr.bf16.mxu0 0
        %1788 = vmatpush1.bf16.msra.mxu0 0
        %1789 = vmatprep.subr.bf16.mxu0 0
        %1790 = vmatpush1.bf16.msra.mxu0 0
        %1791 = vmatprep.subr.bf16.mxu0 0
        %1792 = vmatpush1.bf16.msra.mxu0 0
        %1793 = vmatprep.mubr.bf16.mxu0 0
        %1794 = vmatmul.mubr.bf16.gmra.mrb[0].mxu0 %v1735
        %v1795 = vpop.f32.mrb[0].mxu0
        %v1796 = vadd.f32 0.0, %v1795
        %v1797 = vpop.f32.mrb[0].mxu0
        %v1798 = vpop.f32.mrb[0].mxu0
        %v1799 = vadd.f32 0.0, %v1798
        %v1800 = vpop.f32.mrb[0].mxu0
        %1801 = vmatprep.mubr.bf16.mxu0 0
        %1802 = vmatmul.mubr.bf16.gmra.mrb[0].mxu0 %v1738
        %v1803 = vpop.f32.mrb[0].mxu0
        %v1804 = vadd.f32 0.0, %v1803
        %v1805 = vpop.f32.mrb[0].mxu0
        %v1806 = vpop.f32.mrb[0].mxu0
        %v1807 = vadd.f32 0.0, %v1806
        %v1808 = vpop.f32.mrb[0].mxu0
        %1809 = vmatprep.mubr.bf16.mxu0 0
        %1810 = vmatmul.mubr.bf16.gmra.mrb[0].mxu0 %v1741
        %v1811 = vpop.f32.mrb[0].mxu0
        %v1812 = vadd.f32 0.0, %v1811
        %v1813 = vpop.f32.mrb[0].mxu0
        %v1814 = vpop.f32.mrb[0].mxu0
        %v1815 = vadd.f32 0.0, %v1814
        %v1816 = vpop.f32.mrb[0].mxu0
        %1817 = vmatprep.mubr.bf16.mxu0 0
        %1818 = vmatmul.mubr.bf16.gmra.mrb[0].mxu0 %v1744
        %v1819 = vpop.f32.mrb[0].mxu0
        %v1820 = vadd.f32 0.0, %v1819
        %v1821 = vpop.f32.mrb[0].mxu0
        %v1822 = vpop.f32.mrb[0].mxu0
        %v1823 = vadd.f32 0.0, %v1822
        %v1824 = vpop.f32.mrb[0].mxu0
        %1825 = vmatprep.mubr.bf16.mxu0 0
        %1826 = vmatmul.mubr.bf16.gmra.mrb[0].mxu0 %v1747
        %v1827 = vpop.f32.mrb[0].mxu0
        %v1828 = vadd.f32 0.0, %v1827
        %v1829 = vpop.f32.mrb[0].mxu0
        %v1830 = vpop.f32.mrb[0].mxu0
        %v1831 = vadd.f32 0.0, %v1830
        %v1832 = vpop.f32.mrb[0].mxu0
        %1833 = vmatprep.mubr.bf16.mxu0 0
        %1834 = vmatmul.mubr.bf16.gmra.mrb[0].mxu0 %v1750
        %v1835 = vpop.f32.mrb[0].mxu0
        %v1836 = vadd.f32 0.0, %v1835
        %v1837 = vpop.f32.mrb[0].mxu0
        %v1838 = vpop.f32.mrb[0].mxu0
        %v1839 = vadd.f32 0.0, %v1838
        %v1840 = vpop.f32.mrb[0].mxu0
        %1841 = vmatprep.mubr.bf16.mxu0 0
        %1842 = vmatmul.mubr.bf16.gmra.mrb[0].mxu0 %v1753
        %v1843 = vpop.f32.mrb[0].mxu0
        %v1844 = vadd.f32 0.0, %v1843
        %v1845 = vpop.f32.mrb[0].mxu0
        %v1846 = vpop.f32.mrb[0].mxu0
        %v1847 = vadd.f32 0.0, %v1846
        %v1848 = vpop.f32.mrb[0].mxu0
        %1849 = vmatprep.mubr.bf16.mxu0 0
        %1850 = vmatmul.mubr.bf16.gmra.mrb[0].mxu0 %v1756
        %v1851 = vpop.f32.mrb[0].mxu0
        %v1852 = vadd.f32 0.0, %v1851
        %v1853 = vpop.f32.mrb[0].mxu0
        %v1854 = vpop.f32.mrb[0].mxu0
        %v1855 = vadd.f32 0.0, %v1854
        %v1856 = vpop.f32.mrb[0].mxu0
        %1857 = vdwg.mxu0
        %v1858 = vadd.f32 %v1604, %v1796
        %v1859 = vadd.f32 %v1605, %v1799
        %v1860 = vadd.f32 %v1606, %v1804
        %v1861 = vadd.f32 %v1607, %v1807
        %v1862 = vadd.f32 %v1608, %v1812
        %v1863 = vadd.f32 %v1609, %v1815
        %v1864 = vadd.f32 %v1610, %v1820
        %v1865 = vadd.f32 %v1611, %v1823
        %v1866 = vadd.f32 %v1612, %v1828
        %v1867 = vadd.f32 %v1613, %v1831
        %v1868 = vadd.f32 %v1614, %v1836
        %v1869 = vadd.f32 %v1615, %v1839
        %v1870 = vadd.f32 %v1616, %v1844
        %v1871 = vadd.f32 %v1617, %v1847
        %v1872 = vadd.f32 %v1618, %v1852
        %v1873 = vadd.f32 %v1619, %v1855
        %s1874 = scalar_lea.vmem %s247, 24
        %v1875 = vld [vmem:[%s1874] sm:$0xf]
        %v1876 = vld [vmem:[%s1874 + $0x4] sm:$0xf]
        %v1877 = vld [vmem:[%s1874 + $0xc] sm:$0xf]
        %v1878 = vld [vmem:[%s1874 + $0x10] sm:$0xf]
        %v1879 = vld [vmem:[%s1874 + $0x18] sm:$0xf]
        %v1880 = vld [vmem:[%s1874 + $0x1c] sm:$0xf]
        %v1881 = vld [vmem:[%s1874 + $0x24] sm:$0xf]
        %v1882 = vld [vmem:[%s1874 + $0x28] sm:$0xf]
        %v1883 = vld [vmem:[%s1874 + $0x30] sm:$0xf]
        %v1884 = vld [vmem:[%s1874 + $0x34] sm:$0xf]
        %v1885 = vld [vmem:[%s1874 + $0x3c] sm:$0xf]
        %v1886 = vld [vmem:[%s1874 + $0x40] sm:$0xf]
        %v1887 = vld [vmem:[%s1874 + $0x48] sm:$0xf]
        %v1888 = vld [vmem:[%s1874 + $0x4c] sm:$0xf]
        %v1889 = vld [vmem:[%s1874 + $0x54] sm:$0xf]
        %v1890 = vld [vmem:[%s1874 + $0x58] sm:$0xf]
        %s1891 = scalar_lea.vmem %s1, 12
        %v1892 = vld [vmem:[%s1891] sm:$0x3]
        %v1909 = vunpack.c.l.b16 %v1875
        %v1910 = vunpack.c.l.b16 %v1876
        %v1911 = vunpack.c.l.b16 %v1877
        %v1912 = vunpack.c.l.b16 %v1878
        %v1913 = vunpack.c.l.b16 %v1879
        %v1914 = vunpack.c.l.b16 %v1880
        %v1915 = vunpack.c.l.b16 %v1881
        %v1916 = vunpack.c.l.b16 %v1882
        %v1917 = vunpack.c.l.b16 %v1883
        %v1918 = vunpack.c.l.b16 %v1884
        %v1919 = vunpack.c.l.b16 %v1885
        %v1920 = vunpack.c.l.b16 %v1886
        %v1921 = vunpack.c.l.b16 %v1887
        %v1922 = vunpack.c.l.b16 %v1888
        %v1923 = vunpack.c.l.b16 %v1889
        %v1924 = vunpack.c.l.b16 %v1890
        %v1925 = vpack.c.b16 %v1910, %v1909
        %v1926 = vpack.c.b16 %v1912, %v1911
        %v1927 = vpack.c.b16 %v1914, %v1913
        %v1928 = vpack.c.b16 %v1916, %v1915
        %v1929 = vpack.c.b16 %v1918, %v1917
        %v1930 = vpack.c.b16 %v1920, %v1919
        %v1931 = vpack.c.b16 %v1922, %v1921
        %v1932 = vpack.c.b16 %v1924, %v1923
        %v1934 = vsel %vm500, %v1925, 0
        %v1937 = vsel %vm500, %v1926, 0
        %v1940 = vsel %vm500, %v1927, 0
        %v1943 = vsel %vm500, %v1928, 0
        %v1946 = vsel %vm500, %v1929, 0
        %v1949 = vsel %vm500, %v1930, 0
        %v1952 = vsel %vm500, %v1931, 0
        %v1955 = vsel %vm500, %v1932, 0
        %v1958 = vsel %vm525, %v1892, 0
        %1960 = vmatprep.subr.bf16.mxu0 0
        %1961 = vmatpush1.bf16.msra.mxu0 %v1958
        %1962 = vmatprep.subr.bf16.mxu0 0
        %1963 = vmatpush1.bf16.msra.mxu0 0
        %1964 = vmatprep.subr.bf16.mxu0 0
        %1965 = vmatpush1.bf16.msra.mxu0 0
        %1966 = vmatprep.subr.bf16.mxu0 0
        %1967 = vmatpush1.bf16.msra.mxu0 0
        %1968 = vmatprep.subr.bf16.mxu0 0
        %1969 = vmatpush1.bf16.msra.mxu0 0
        %1970 = vmatprep.subr.bf16.mxu0 0
        %1971 = vmatpush1.bf16.msra.mxu0 0
        %1972 = vmatprep.subr.bf16.mxu0 0
        %1973 = vmatpush1.bf16.msra.mxu0 0
        %1974 = vmatprep.subr.bf16.mxu0 0
        %1975 = vmatpush1.bf16.msra.mxu0 0
        %1976 = vmatprep.subr.bf16.mxu0 0
        %1977 = vmatpush1.bf16.msra.mxu0 0
        %1978 = vmatprep.subr.bf16.mxu0 0
        %1979 = vmatpush1.bf16.msra.mxu0 0
        %1980 = vmatprep.subr.bf16.mxu0 0
        %1981 = vmatpush1.bf16.msra.mxu0 0
        %1982 = vmatprep.subr.bf16.mxu0 0
        %1983 = vmatpush1.bf16.msra.mxu0 0
        %1984 = vmatprep.subr.bf16.mxu0 0
        %1985 = vmatpush1.bf16.msra.mxu0 0
        %1986 = vmatprep.subr.bf16.mxu0 0
        %1987 = vmatpush1.bf16.msra.mxu0 0
        %1988 = vmatprep.subr.bf16.mxu0 0
        %1989 = vmatpush1.bf16.msra.mxu0 0
        %1990 = vmatprep.subr.bf16.mxu0 0
        %1991 = vmatpush1.bf16.msra.mxu0 0
        %1992 = vmatprep.mubr.bf16.mxu0 0
        %1993 = vmatmul.mubr.bf16.gmra.mrb[0].mxu0 %v1934
        %v1994 = vpop.f32.mrb[0].mxu0
        %v1995 = vadd.f32 0.0, %v1994
        %v1996 = vpop.f32.mrb[0].mxu0
        %v1997 = vpop.f32.mrb[0].mxu0
        %v1998 = vadd.f32 0.0, %v1997
        %v1999 = vpop.f32.mrb[0].mxu0
        %2000 = vmatprep.mubr.bf16.mxu0 0
        %2001 = vmatmul.mubr.bf16.gmra.mrb[0].mxu0 %v1937
        %v2002 = vpop.f32.mrb[0].mxu0
        %v2003 = vadd.f32 0.0, %v2002
        %v2004 = vpop.f32.mrb[0].mxu0
        %v2005 = vpop.f32.mrb[0].mxu0
        %v2006 = vadd.f32 0.0, %v2005
        %v2007 = vpop.f32.mrb[0].mxu0
        %2008 = vmatprep.mubr.bf16.mxu0 0
        %2009 = vmatmul.mubr.bf16.gmra.mrb[0].mxu0 %v1940
        %v2010 = vpop.f32.mrb[0].mxu0
        %v2011 = vadd.f32 0.0, %v2010
        %v2012 = vpop.f32.mrb[0].mxu0
        %v2013 = vpop.f32.mrb[0].mxu0
        %v2014 = vadd.f32 0.0, %v2013
        %v2015 = vpop.f32.mrb[0].mxu0
        %2016 = vmatprep.mubr.bf16.mxu0 0
        %2017 = vmatmul.mubr.bf16.gmra.mrb[0].mxu0 %v1943
        %v2018 = vpop.f32.mrb[0].mxu0
        %v2019 = vadd.f32 0.0, %v2018
        %v2020 = vpop.f32.mrb[0].mxu0
        %v2021 = vpop.f32.mrb[0].mxu0
        %v2022 = vadd.f32 0.0, %v2021
        %v2023 = vpop.f32.mrb[0].mxu0
        %2024 = vmatprep.mubr.bf16.mxu0 0
        %2025 = vmatmul.mubr.bf16.gmra.mrb[0].mxu0 %v1946
        %v2026 = vpop.f32.mrb[0].mxu0
        %v2027 = vadd.f32 0.0, %v2026
        %v2028 = vpop.f32.mrb[0].mxu0
        %v2029 = vpop.f32.mrb[0].mxu0
        %v2030 = vadd.f32 0.0, %v2029
        %v2031 = vpop.f32.mrb[0].mxu0
        %2032 = vmatprep.mubr.bf16.mxu0 0
        %2033 = vmatmul.mubr.bf16.gmra.mrb[0].mxu0 %v1949
        %v2034 = vpop.f32.mrb[0].mxu0
        %v2035 = vadd.f32 0.0, %v2034
        %v2036 = vpop.f32.mrb[0].mxu0
        %v2037 = vpop.f32.mrb[0].mxu0
        %v2038 = vadd.f32 0.0, %v2037
        %v2039 = vpop.f32.mrb[0].mxu0
        %2040 = vmatprep.mubr.bf16.mxu0 0
        %2041 = vmatmul.mubr.bf16.gmra.mrb[0].mxu0 %v1952
        %v2042 = vpop.f32.mrb[0].mxu0
        %v2043 = vadd.f32 0.0, %v2042
        %v2044 = vpop.f32.mrb[0].mxu0
        %v2045 = vpop.f32.mrb[0].mxu0
        %v2046 = vadd.f32 0.0, %v2045
        %v2047 = vpop.f32.mrb[0].mxu0
        %2048 = vmatprep.mubr.bf16.mxu0 0
        %2049 = vmatmul.mubr.bf16.gmra.mrb[0].mxu0 %v1955
        %v2050 = vpop.f32.mrb[0].mxu0
        %v2051 = vadd.f32 0.0, %v2050
        %v2052 = vpop.f32.mrb[0].mxu0
        %v2053 = vpop.f32.mrb[0].mxu0
        %v2054 = vadd.f32 0.0, %v2053
        %v2055 = vpop.f32.mrb[0].mxu0
        %2056 = vdwg.mxu0
        %v2057 = vadd.f32 %v1858, %v1995
        %v2058 = vadd.f32 %v1859, %v1998
        %v2059 = vadd.f32 %v1860, %v2003
        %v2060 = vadd.f32 %v1861, %v2006
        %v2061 = vadd.f32 %v1862, %v2011
        %v2062 = vadd.f32 %v1863, %v2014
        %v2063 = vadd.f32 %v1864, %v2019
        %v2064 = vadd.f32 %v1865, %v2022
        %v2065 = vadd.f32 %v1866, %v2027
        %v2066 = vadd.f32 %v1867, %v2030
        %v2067 = vadd.f32 %v1868, %v2035
        %v2068 = vadd.f32 %v1869, %v2038
        %v2069 = vadd.f32 %v1870, %v2043
        %v2070 = vadd.f32 %v1871, %v2046
        %v2071 = vadd.f32 %v1872, %v2051
        %v2072 = vadd.f32 %v1873, %v2054
        %v2073 = vld [vmem:[%s1874] sm:$0xf]
        %v2074 = vld [vmem:[%s1874 + $0x4] sm:$0xf]
        %v2075 = vld [vmem:[%s1874 + $0x8] sm:$0x1]
        %v2076 = vld [vmem:[%s1874 + $0xc] sm:$0xf]
        %v2077 = vld [vmem:[%s1874 + $0x10] sm:$0xf]
        %v2078 = vld [vmem:[%s1874 + $0x14] sm:$0x1]
        %v2079 = vld [vmem:[%s1874 + $0x18] sm:$0xf]
        %v2080 = vld [vmem:[%s1874 + $0x1c] sm:$0xf]
        %v2081 = vld [vmem:[%s1874 + $0x20] sm:$0x1]
        %v2082 = vld [vmem:[%s1874 + $0x24] sm:$0xf]
        %v2083 = vld [vmem:[%s1874 + $0x28] sm:$0xf]
        %v2084 = vld [vmem:[%s1874 + $0x2c] sm:$0x1]
        %v2085 = vld [vmem:[%s1874 + $0x30] sm:$0xf]
        %v2086 = vld [vmem:[%s1874 + $0x34] sm:$0xf]
        %v2087 = vld [vmem:[%s1874 + $0x38] sm:$0x1]
        %v2088 = vld [vmem:[%s1874 + $0x3c] sm:$0xf]
        %v2089 = vld [vmem:[%s1874 + $0x40] sm:$0xf]
        %v2090 = vld [vmem:[%s1874 + $0x44] sm:$0x1]
        %v2091 = vld [vmem:[%s1874 + $0x48] sm:$0xf]
        %v2092 = vld [vmem:[%s1874 + $0x4c] sm:$0xf]
        %v2093 = vld [vmem:[%s1874 + $0x50] sm:$0x1]
        %v2094 = vld [vmem:[%s1874 + $0x54] sm:$0xf]
        %v2095 = vld [vmem:[%s1874 + $0x58] sm:$0xf]
        %v2096 = vld [vmem:[%s1874 + $0x5c] sm:$0x1]
        %v2098 = vshrl.u32 %v2073, 16
        %v2100 = vrot.slane %v2098, 4
        %v2101 = vshll.u32 %v2073, 16
        %v2103 = vrot.slane %v2101, 5
        %v2104 = vor.u32 %v2100, %v2103
        %v2105 = vrot.slane %v2104, 4
        %v2107 = vshll.u32 %v2074, 16
        %v2109 = vrot.slane %v2107, 5
        %v2110 = vsel %vm281, %v2105, %v2109
        %v2111 = vshrl.u32 %v2074, 16
        %v2113 = vrot.slane %v2111, 4
        %v2114 = vor.u32 %v2113, %v2109
        %v2115 = vrot.slane %v2114, 4
        %v2117 = vshll.u32 %v2075, 16
        %v2119 = vrot.slane %v2117, 5
        %v2120 = vsel %vm281, %v2115, %v2119
        %v2122 = vshrl.u32 %v2076, 16
        %v2124 = vrot.slane %v2122, 4
        %v2125 = vshll.u32 %v2076, 16
        %v2127 = vrot.slane %v2125, 5
        %v2128 = vor.u32 %v2124, %v2127
        %v2129 = vrot.slane %v2128, 4
        %v2131 = vshll.u32 %v2077, 16
        %v2133 = vrot.slane %v2131, 5
        %v2134 = vsel %vm281, %v2129, %v2133
        %v2135 = vshrl.u32 %v2077, 16
        %v2137 = vrot.slane %v2135, 4
        %v2138 = vor.u32 %v2137, %v2133
        %v2139 = vrot.slane %v2138, 4
        %v2141 = vshll.u32 %v2078, 16
        %v2143 = vrot.slane %v2141, 5
        %v2144 = vsel %vm281, %v2139, %v2143
        %v2146 = vshrl.u32 %v2079, 16
        %v2148 = vrot.slane %v2146, 4
        %v2149 = vshll.u32 %v2079, 16
        %v2151 = vrot.slane %v2149, 5
        %v2152 = vor.u32 %v2148, %v2151
        %v2153 = vrot.slane %v2152, 4
        %v2155 = vshll.u32 %v2080, 16
        %v2157 = vrot.slane %v2155, 5
        %v2158 = vsel %vm281, %v2153, %v2157
        %v2159 = vshrl.u32 %v2080, 16
        %v2161 = vrot.slane %v2159, 4
        %v2162 = vor.u32 %v2161, %v2157
        %v2163 = vrot.slane %v2162, 4
        %v2165 = vshll.u32 %v2081, 16
        %v2167 = vrot.slane %v2165, 5
        %v2168 = vsel %vm281, %v2163, %v2167
        %v2170 = vshrl.u32 %v2082, 16
        %v2172 = vrot.slane %v2170, 4
        %v2173 = vshll.u32 %v2082, 16
        %v2175 = vrot.slane %v2173, 5
        %v2176 = vor.u32 %v2172, %v2175
        %v2177 = vrot.slane %v2176, 4
        %v2179 = vshll.u32 %v2083, 16
        %v2181 = vrot.slane %v2179, 5
        %v2182 = vsel %vm281, %v2177, %v2181
        %v2183 = vshrl.u32 %v2083, 16
        %v2185 = vrot.slane %v2183, 4
        %v2186 = vor.u32 %v2185, %v2181
        %v2187 = vrot.slane %v2186, 4
        %v2189 = vshll.u32 %v2084, 16
        %v2191 = vrot.slane %v2189, 5
        %v2192 = vsel %vm281, %v2187, %v2191
        %v2194 = vshrl.u32 %v2085, 16
        %v2196 = vrot.slane %v2194, 4
        %v2197 = vshll.u32 %v2085, 16
        %v2199 = vrot.slane %v2197, 5
        %v2200 = vor.u32 %v2196, %v2199
        %v2201 = vrot.slane %v2200, 4
        %v2203 = vshll.u32 %v2086, 16
        %v2205 = vrot.slane %v2203, 5
        %v2206 = vsel %vm281, %v2201, %v2205
        %v2207 = vshrl.u32 %v2086, 16
        %v2209 = vrot.slane %v2207, 4
        %v2210 = vor.u32 %v2209, %v2205
        %v2211 = vrot.slane %v2210, 4
        %v2213 = vshll.u32 %v2087, 16
        %v2215 = vrot.slane %v2213, 5
        %v2216 = vsel %vm281, %v2211, %v2215
        %v2218 = vshrl.u32 %v2088, 16
        %v2220 = vrot.slane %v2218, 4
        %v2221 = vshll.u32 %v2088, 16
        %v2223 = vrot.slane %v2221, 5
        %v2224 = vor.u32 %v2220, %v2223
        %v2225 = vrot.slane %v2224, 4
        %v2227 = vshll.u32 %v2089, 16
        %v2229 = vrot.slane %v2227, 5
        %v2230 = vsel %vm281, %v2225, %v2229
        %v2231 = vshrl.u32 %v2089, 16
        %v2233 = vrot.slane %v2231, 4
        %v2234 = vor.u32 %v2233, %v2229
        %v2235 = vrot.slane %v2234, 4
        %v2237 = vshll.u32 %v2090, 16
        %v2239 = vrot.slane %v2237, 5
        %v2240 = vsel %vm281, %v2235, %v2239
        %v2242 = vshrl.u32 %v2091, 16
        %v2244 = vrot.slane %v2242, 4
        %v2245 = vshll.u32 %v2091, 16
        %v2247 = vrot.slane %v2245, 5
        %v2248 = vor.u32 %v2244, %v2247
        %v2249 = vrot.slane %v2248, 4
        %v2251 = vshll.u32 %v2092, 16
        %v2253 = vrot.slane %v2251, 5
        %v2254 = vsel %vm281, %v2249, %v2253
        %v2255 = vshrl.u32 %v2092, 16
        %v2257 = vrot.slane %v2255, 4
        %v2258 = vor.u32 %v2257, %v2253
        %v2259 = vrot.slane %v2258, 4
        %v2261 = vshll.u32 %v2093, 16
        %v2263 = vrot.slane %v2261, 5
        %v2264 = vsel %vm281, %v2259, %v2263
        %v2266 = vshrl.u32 %v2094, 16
        %v2268 = vrot.slane %v2266, 4
        %v2269 = vshll.u32 %v2094, 16
        %v2271 = vrot.slane %v2269, 5
        %v2272 = vor.u32 %v2268, %v2271
        %v2273 = vrot.slane %v2272, 4
        %v2275 = vshll.u32 %v2095, 16
        %v2277 = vrot.slane %v2275, 5
        %v2278 = vsel %vm281, %v2273, %v2277
        %v2279 = vshrl.u32 %v2095, 16
        %v2281 = vrot.slane %v2279, 4
        %v2282 = vor.u32 %v2281, %v2277
        %v2283 = vrot.slane %v2282, 4
        %v2285 = vshll.u32 %v2096, 16
        %v2287 = vrot.slane %v2285, 5
        %v2288 = vsel %vm281, %v2283, %v2287
        %s2289 = scalar_lea.vmem %s1, 14
        %v2290 = vld [vmem:[%s2289] sm:$0x3]
        %v2291 = vunpack.c.l.b16 %v2110
        %v2292 = vunpack.c.l.b16 %v2120
        %v2293 = vunpack.c.l.b16 %v2134
        %v2294 = vunpack.c.l.b16 %v2144
        %v2295 = vunpack.c.l.b16 %v2158
        %v2296 = vunpack.c.l.b16 %v2168
        %v2297 = vunpack.c.l.b16 %v2182
        %v2298 = vunpack.c.l.b16 %v2192
        %v2299 = vunpack.c.l.b16 %v2206
        %v2300 = vunpack.c.l.b16 %v2216
        %v2301 = vunpack.c.l.b16 %v2230
        %v2302 = vunpack.c.l.b16 %v2240
        %v2303 = vunpack.c.l.b16 %v2254
        %v2304 = vunpack.c.l.b16 %v2264
        %v2305 = vunpack.c.l.b16 %v2278
        %v2306 = vunpack.c.l.b16 %v2288
        %v2307 = vpack.c.b16 %v2292, %v2291
        %v2308 = vpack.c.b16 %v2294, %v2293
        %v2309 = vpack.c.b16 %v2296, %v2295
        %v2310 = vpack.c.b16 %v2298, %v2297
        %v2311 = vpack.c.b16 %v2300, %v2299
        %v2312 = vpack.c.b16 %v2302, %v2301
        %v2313 = vpack.c.b16 %v2304, %v2303
        %v2314 = vpack.c.b16 %v2306, %v2305
        %v2316 = vsel %vm500, %v2307, 0
        %v2319 = vsel %vm500, %v2308, 0
        %v2322 = vsel %vm500, %v2309, 0
        %v2325 = vsel %vm500, %v2310, 0
        %v2328 = vsel %vm500, %v2311, 0
        %v2331 = vsel %vm500, %v2312, 0
        %v2334 = vsel %vm500, %v2313, 0
        %v2337 = vsel %vm500, %v2314, 0
        %v2340 = vsel %vm525, %v2290, 0
        %2342 = vmatprep.subr.bf16.mxu0 0
        %2343 = vmatpush1.bf16.msra.mxu0 %v2340
        %2344 = vmatprep.subr.bf16.mxu0 0
        %2345 = vmatpush1.bf16.msra.mxu0 0
        %2346 = vmatprep.subr.bf16.mxu0 0
        %2347 = vmatpush1.bf16.msra.mxu0 0
        %2348 = vmatprep.subr.bf16.mxu0 0
        %2349 = vmatpush1.bf16.msra.mxu0 0
        %2350 = vmatprep.subr.bf16.mxu0 0
        %2351 = vmatpush1.bf16.msra.mxu0 0
        %2352 = vmatprep.subr.bf16.mxu0 0
        %2353 = vmatpush1.bf16.msra.mxu0 0
        %2354 = vmatprep.subr.bf16.mxu0 0
        %2355 = vmatpush1.bf16.msra.mxu0 0
        %2356 = vmatprep.subr.bf16.mxu0 0
        %2357 = vmatpush1.bf16.msra.mxu0 0
        %2358 = vmatprep.subr.bf16.mxu0 0
        %2359 = vmatpush1.bf16.msra.mxu0 0
        %2360 = vmatprep.subr.bf16.mxu0 0
        %2361 = vmatpush1.bf16.msra.mxu0 0
        %2362 = vmatprep.subr.bf16.mxu0 0
        %2363 = vmatpush1.bf16.msra.mxu0 0
        %2364 = vmatprep.subr.bf16.mxu0 0
        %2365 = vmatpush1.bf16.msra.mxu0 0
        %2366 = vmatprep.subr.bf16.mxu0 0
        %2367 = vmatpush1.bf16.msra.mxu0 0
        %2368 = vmatprep.subr.bf16.mxu0 0
        %2369 = vmatpush1.bf16.msra.mxu0 0
        %2370 = vmatprep.subr.bf16.mxu0 0
        %2371 = vmatpush1.bf16.msra.mxu0 0
        %2372 = vmatprep.subr.bf16.mxu0 0
        %2373 = vmatpush1.bf16.msra.mxu0 0
        %2374 = vmatprep.mubr.bf16.mxu0 0
        %2375 = vmatmul.mubr.bf16.gmra.mrb[0].mxu0 %v2316
        %v2376 = vpop.f32.mrb[0].mxu0
        %v2377 = vadd.f32 0.0, %v2376
        %v2378 = vpop.f32.mrb[0].mxu0
        %v2379 = vpop.f32.mrb[0].mxu0
        %v2380 = vadd.f32 0.0, %v2379
        %v2381 = vpop.f32.mrb[0].mxu0
        %2382 = vmatprep.mubr.bf16.mxu0 0
        %2383 = vmatmul.mubr.bf16.gmra.mrb[0].mxu0 %v2319
        %v2384 = vpop.f32.mrb[0].mxu0
        %v2385 = vadd.f32 0.0, %v2384
        %v2386 = vpop.f32.mrb[0].mxu0
        %v2387 = vpop.f32.mrb[0].mxu0
        %v2388 = vadd.f32 0.0, %v2387
        %v2389 = vpop.f32.mrb[0].mxu0
        %2390 = vmatprep.mubr.bf16.mxu0 0
        %2391 = vmatmul.mubr.bf16.gmra.mrb[0].mxu0 %v2322
        %v2392 = vpop.f32.mrb[0].mxu0
        %v2393 = vadd.f32 0.0, %v2392
        %v2394 = vpop.f32.mrb[0].mxu0
        %v2395 = vpop.f32.mrb[0].mxu0
        %v2396 = vadd.f32 0.0, %v2395
        %v2397 = vpop.f32.mrb[0].mxu0
        %2398 = vmatprep.mubr.bf16.mxu0 0
        %2399 = vmatmul.mubr.bf16.gmra.mrb[0].mxu0 %v2325
        %v2400 = vpop.f32.mrb[0].mxu0
        %v2401 = vadd.f32 0.0, %v2400
        %v2402 = vpop.f32.mrb[0].mxu0
        %v2403 = vpop.f32.mrb[0].mxu0
        %v2404 = vadd.f32 0.0, %v2403
        %v2405 = vpop.f32.mrb[0].mxu0
        %2406 = vmatprep.mubr.bf16.mxu0 0
        %2407 = vmatmul.mubr.bf16.gmra.mrb[0].mxu0 %v2328
        %v2408 = vpop.f32.mrb[0].mxu0
        %v2409 = vadd.f32 0.0, %v2408
        %v2410 = vpop.f32.mrb[0].mxu0
        %v2411 = vpop.f32.mrb[0].mxu0
        %v2412 = vadd.f32 0.0, %v2411
        %v2413 = vpop.f32.mrb[0].mxu0
        %2414 = vmatprep.mubr.bf16.mxu0 0
        %2415 = vmatmul.mubr.bf16.gmra.mrb[0].mxu0 %v2331
        %v2416 = vpop.f32.mrb[0].mxu0
        %v2417 = vadd.f32 0.0, %v2416
        %v2418 = vpop.f32.mrb[0].mxu0
        %v2419 = vpop.f32.mrb[0].mxu0
        %v2420 = vadd.f32 0.0, %v2419
        %v2421 = vpop.f32.mrb[0].mxu0
        %2422 = vmatprep.mubr.bf16.mxu0 0
        %2423 = vmatmul.mubr.bf16.gmra.mrb[0].mxu0 %v2334
        %v2424 = vpop.f32.mrb[0].mxu0
        %v2425 = vadd.f32 0.0, %v2424
        %v2426 = vpop.f32.mrb[0].mxu0
        %v2427 = vpop.f32.mrb[0].mxu0
        %v2428 = vadd.f32 0.0, %v2427
        %v2429 = vpop.f32.mrb[0].mxu0
        %2430 = vmatprep.mubr.bf16.mxu0 0
        %2431 = vmatmul.mubr.bf16.gmra.mrb[0].mxu0 %v2337
        %v2432 = vpop.f32.mrb[0].mxu0
        %v2433 = vadd.f32 0.0, %v2432
        %v2434 = vpop.f32.mrb[0].mxu0
        %v2435 = vpop.f32.mrb[0].mxu0
        %v2436 = vadd.f32 0.0, %v2435
        %v2437 = vpop.f32.mrb[0].mxu0
        %2438 = vdwg.mxu0
        %v2439 = vadd.f32 %v2057, %v2377
        %v2440 = vadd.f32 %v2058, %v2380
        %v2441 = vadd.f32 %v2059, %v2385
        %v2442 = vadd.f32 %v2060, %v2388
        %v2443 = vadd.f32 %v2061, %v2393
        %v2444 = vadd.f32 %v2062, %v2396
        %v2445 = vadd.f32 %v2063, %v2401
        %v2446 = vadd.f32 %v2064, %v2404
        %v2447 = vadd.f32 %v2065, %v2409
        %v2448 = vadd.f32 %v2066, %v2412
        %v2449 = vadd.f32 %v2067, %v2417
        %v2450 = vadd.f32 %v2068, %v2420
        %v2451 = vadd.f32 %v2069, %v2425
        %v2452 = vadd.f32 %v2070, %v2428
        %v2453 = vadd.f32 %v2071, %v2433
        %v2454 = vadd.f32 %v2072, %v2436
        %v2455 = vld [vmem:[%s1874] sm:$0xe]
        %v2456 = vld [vmem:[%s1874 + $0xc] sm:$0xe]
        %v2457 = vld [vmem:[%s1874 + $0x18] sm:$0xe]
        %v2458 = vld [vmem:[%s1874 + $0x24] sm:$0xe]
        %v2459 = vld [vmem:[%s1874 + $0x30] sm:$0xe]
        %v2460 = vld [vmem:[%s1874 + $0x3c] sm:$0xe]
        %v2461 = vld [vmem:[%s1874 + $0x48] sm:$0xe]
        %v2462 = vld [vmem:[%s1874 + $0x54] sm:$0xe]
        %v2487 = vrot.slane %v2455, 5
        %v2488 = vrot.slane %v2487, 4
        %v2489 = vrot.slane %v2074, 5
        %v2490 = vsel %vm816, %v2488, %v2489
        %v2491 = vrot.slane %v2489, 4
        %v2492 = vrot.slane %v2075, 5
        %v2493 = vsel %vm816, %v2491, %v2492
        %v2494 = vrot.slane %v2456, 5
        %v2495 = vrot.slane %v2494, 4
        %v2496 = vrot.slane %v2077, 5
        %v2497 = vsel %vm816, %v2495, %v2496
        %v2498 = vrot.slane %v2496, 4
        %v2499 = vrot.slane %v2078, 5
        %v2500 = vsel %vm816, %v2498, %v2499
        %v2501 = vrot.slane %v2457, 5
        %v2502 = vrot.slane %v2501, 4
        %v2503 = vrot.slane %v2080, 5
        %v2504 = vsel %vm816, %v2502, %v2503
        %v2505 = vrot.slane %v2503, 4
        %v2506 = vrot.slane %v2081, 5
        %v2507 = vsel %vm816, %v2505, %v2506
        %v2508 = vrot.slane %v2458, 5
        %v2509 = vrot.slane %v2508, 4
        %v2510 = vrot.slane %v2083, 5
        %v2511 = vsel %vm816, %v2509, %v2510
        %v2512 = vrot.slane %v2510, 4
        %v2513 = vrot.slane %v2084, 5
        %v2514 = vsel %vm816, %v2512, %v2513
        %v2515 = vrot.slane %v2459, 5
        %v2516 = vrot.slane %v2515, 4
        %v2517 = vrot.slane %v2086, 5
        %v2518 = vsel %vm816, %v2516, %v2517
        %v2519 = vrot.slane %v2517, 4
        %v2520 = vrot.slane %v2087, 5
        %v2521 = vsel %vm816, %v2519, %v2520
        %v2522 = vrot.slane %v2460, 5
        %v2523 = vrot.slane %v2522, 4
        %v2524 = vrot.slane %v2089, 5
        %v2525 = vsel %vm816, %v2523, %v2524
        %v2526 = vrot.slane %v2524, 4
        %v2527 = vrot.slane %v2090, 5
        %v2528 = vsel %vm816, %v2526, %v2527
        %v2529 = vrot.slane %v2461, 5
        %v2530 = vrot.slane %v2529, 4
        %v2531 = vrot.slane %v2092, 5
        %v2532 = vsel %vm816, %v2530, %v2531
        %v2533 = vrot.slane %v2531, 4
        %v2534 = vrot.slane %v2093, 5
        %v2535 = vsel %vm816, %v2533, %v2534
        %v2536 = vrot.slane %v2462, 5
        %v2537 = vrot.slane %v2536, 4
        %v2538 = vrot.slane %v2095, 5
        %v2539 = vsel %vm816, %v2537, %v2538
        %v2540 = vrot.slane %v2538, 4
        %v2541 = vrot.slane %v2096, 5
        %v2542 = vsel %vm816, %v2540, %v2541
        %s2543 = scalar_lea.vmem %s1, 16
        %v2544 = vld [vmem:[%s2543] sm:$0x3]
        %v2545 = vunpack.c.l.b16 %v2490
        %v2546 = vunpack.c.l.b16 %v2493
        %v2547 = vunpack.c.l.b16 %v2497
        %v2548 = vunpack.c.l.b16 %v2500
        %v2549 = vunpack.c.l.b16 %v2504
        %v2550 = vunpack.c.l.b16 %v2507
        %v2551 = vunpack.c.l.b16 %v2511
        %v2552 = vunpack.c.l.b16 %v2514
        %v2553 = vunpack.c.l.b16 %v2518
        %v2554 = vunpack.c.l.b16 %v2521
        %v2555 = vunpack.c.l.b16 %v2525
        %v2556 = vunpack.c.l.b16 %v2528
        %v2557 = vunpack.c.l.b16 %v2532
        %v2558 = vunpack.c.l.b16 %v2535
        %v2559 = vunpack.c.l.b16 %v2539
        %v2560 = vunpack.c.l.b16 %v2542
        %v2561 = vpack.c.b16 %v2546, %v2545
        %v2562 = vpack.c.b16 %v2548, %v2547
        %v2563 = vpack.c.b16 %v2550, %v2549
        %v2564 = vpack.c.b16 %v2552, %v2551
        %v2565 = vpack.c.b16 %v2554, %v2553
        %v2566 = vpack.c.b16 %v2556, %v2555
        %v2567 = vpack.c.b16 %v2558, %v2557
        %v2568 = vpack.c.b16 %v2560, %v2559
        %v2570 = vsel %vm500, %v2561, 0
        %v2573 = vsel %vm500, %v2562, 0
        %v2576 = vsel %vm500, %v2563, 0
        %v2579 = vsel %vm500, %v2564, 0
        %v2582 = vsel %vm500, %v2565, 0
        %v2585 = vsel %vm500, %v2566, 0
        %v2588 = vsel %vm500, %v2567, 0
        %v2591 = vsel %vm500, %v2568, 0
        %v2594 = vsel %vm525, %v2544, 0
        %2596 = vmatprep.subr.bf16.mxu0 0
        %2597 = vmatpush1.bf16.msra.mxu0 %v2594
        %2598 = vmatprep.subr.bf16.mxu0 0
        %2599 = vmatpush1.bf16.msra.mxu0 0
        %2600 = vmatprep.subr.bf16.mxu0 0
        %2601 = vmatpush1.bf16.msra.mxu0 0
        %2602 = vmatprep.subr.bf16.mxu0 0
        %2603 = vmatpush1.bf16.msra.mxu0 0
        %2604 = vmatprep.subr.bf16.mxu0 0
        %2605 = vmatpush1.bf16.msra.mxu0 0
        %2606 = vmatprep.subr.bf16.mxu0 0
        %2607 = vmatpush1.bf16.msra.mxu0 0
        %2608 = vmatprep.subr.bf16.mxu0 0
        %2609 = vmatpush1.bf16.msra.mxu0 0
        %2610 = vmatprep.subr.bf16.mxu0 0
        %2611 = vmatpush1.bf16.msra.mxu0 0
        %2612 = vmatprep.subr.bf16.mxu0 0
        %2613 = vmatpush1.bf16.msra.mxu0 0
        %2614 = vmatprep.subr.bf16.mxu0 0
        %2615 = vmatpush1.bf16.msra.mxu0 0
        %2616 = vmatprep.subr.bf16.mxu0 0
        %2617 = vmatpush1.bf16.msra.mxu0 0
        %2618 = vmatprep.subr.bf16.mxu0 0
        %2619 = vmatpush1.bf16.msra.mxu0 0
        %2620 = vmatprep.subr.bf16.mxu0 0
        %2621 = vmatpush1.bf16.msra.mxu0 0
        %2622 = vmatprep.subr.bf16.mxu0 0
        %2623 = vmatpush1.bf16.msra.mxu0 0
        %2624 = vmatprep.subr.bf16.mxu0 0
        %2625 = vmatpush1.bf16.msra.mxu0 0
        %2626 = vmatprep.subr.bf16.mxu0 0
        %2627 = vmatpush1.bf16.msra.mxu0 0
        %2628 = vmatprep.mubr.bf16.mxu0 0
        %2629 = vmatmul.mubr.bf16.gmra.mrb[0].mxu0 %v2570
        %v2630 = vpop.f32.mrb[0].mxu0
        %v2631 = vadd.f32 0.0, %v2630
        %v2632 = vpop.f32.mrb[0].mxu0
        %v2633 = vpop.f32.mrb[0].mxu0
        %v2634 = vadd.f32 0.0, %v2633
        %v2635 = vpop.f32.mrb[0].mxu0
        %2636 = vmatprep.mubr.bf16.mxu0 0
        %2637 = vmatmul.mubr.bf16.gmra.mrb[0].mxu0 %v2573
        %v2638 = vpop.f32.mrb[0].mxu0
        %v2639 = vadd.f32 0.0, %v2638
        %v2640 = vpop.f32.mrb[0].mxu0
        %v2641 = vpop.f32.mrb[0].mxu0
        %v2642 = vadd.f32 0.0, %v2641
        %v2643 = vpop.f32.mrb[0].mxu0
        %2644 = vmatprep.mubr.bf16.mxu0 0
        %2645 = vmatmul.mubr.bf16.gmra.mrb[0].mxu0 %v2576
        %v2646 = vpop.f32.mrb[0].mxu0
        %v2647 = vadd.f32 0.0, %v2646
        %v2648 = vpop.f32.mrb[0].mxu0
        %v2649 = vpop.f32.mrb[0].mxu0
        %v2650 = vadd.f32 0.0, %v2649
        %v2651 = vpop.f32.mrb[0].mxu0
        %2652 = vmatprep.mubr.bf16.mxu0 0
        %2653 = vmatmul.mubr.bf16.gmra.mrb[0].mxu0 %v2579
        %v2654 = vpop.f32.mrb[0].mxu0
        %v2655 = vadd.f32 0.0, %v2654
        %v2656 = vpop.f32.mrb[0].mxu0
        %v2657 = vpop.f32.mrb[0].mxu0
        %v2658 = vadd.f32 0.0, %v2657
        %v2659 = vpop.f32.mrb[0].mxu0
        %2660 = vmatprep.mubr.bf16.mxu0 0
        %2661 = vmatmul.mubr.bf16.gmra.mrb[0].mxu0 %v2582
        %v2662 = vpop.f32.mrb[0].mxu0
        %v2663 = vadd.f32 0.0, %v2662
        %v2664 = vpop.f32.mrb[0].mxu0
        %v2665 = vpop.f32.mrb[0].mxu0
        %v2666 = vadd.f32 0.0, %v2665
        %v2667 = vpop.f32.mrb[0].mxu0
        %2668 = vmatprep.mubr.bf16.mxu0 0
        %2669 = vmatmul.mubr.bf16.gmra.mrb[0].mxu0 %v2585
        %v2670 = vpop.f32.mrb[0].mxu0
        %v2671 = vadd.f32 0.0, %v2670
        %v2672 = vpop.f32.mrb[0].mxu0
        %v2673 = vpop.f32.mrb[0].mxu0
        %v2674 = vadd.f32 0.0, %v2673
        %v2675 = vpop.f32.mrb[0].mxu0
        %2676 = vmatprep.mubr.bf16.mxu0 0
        %2677 = vmatmul.mubr.bf16.gmra.mrb[0].mxu0 %v2588
        %v2678 = vpop.f32.mrb[0].mxu0
        %v2679 = vadd.f32 0.0, %v2678
        %v2680 = vpop.f32.mrb[0].mxu0
        %v2681 = vpop.f32.mrb[0].mxu0
        %v2682 = vadd.f32 0.0, %v2681
        %v2683 = vpop.f32.mrb[0].mxu0
        %2684 = vmatprep.mubr.bf16.mxu0 0
        %2685 = vmatmul.mubr.bf16.gmra.mrb[0].mxu0 %v2591
        %v2686 = vpop.f32.mrb[0].mxu0
        %v2687 = vadd.f32 0.0, %v2686
        %v2688 = vpop.f32.mrb[0].mxu0
        %v2689 = vpop.f32.mrb[0].mxu0
        %v2690 = vadd.f32 0.0, %v2689
        %v2691 = vpop.f32.mrb[0].mxu0
        %2692 = vdwg.mxu0
        %v2693 = vadd.f32 %v2439, %v2631
        %v2694 = vadd.f32 %v2440, %v2634
        %v2695 = vadd.f32 %v2441, %v2639
        %v2696 = vadd.f32 %v2442, %v2642
        %v2697 = vadd.f32 %v2443, %v2647
        %v2698 = vadd.f32 %v2444, %v2650
        %v2699 = vadd.f32 %v2445, %v2655
        %v2700 = vadd.f32 %v2446, %v2658
        %v2701 = vadd.f32 %v2447, %v2663
        %v2702 = vadd.f32 %v2448, %v2666
        %v2703 = vadd.f32 %v2449, %v2671
        %v2704 = vadd.f32 %v2450, %v2674
        %v2705 = vadd.f32 %v2451, %v2679
        %v2706 = vadd.f32 %v2452, %v2682
        %v2707 = vadd.f32 %v2453, %v2687
        %v2708 = vadd.f32 %v2454, %v2690
        %v2709 = vld [vmem:[%s2] sm:$0x1]
        %v2711 = vlaneseq
        %v2712 = vshrl.u32 %v2711, 7
        %v2713 = vsub.s32 0, %v2712
        %v2714 = vrot.slane %v2709, %v2713
        %v2716 = vadd.f32 %v2693, %v2714
        %v2717 = vadd.f32 %v2694, %v2714
        %v2718 = vadd.f32 %v2695, %v2714
        %v2719 = vadd.f32 %v2696, %v2714
        %v2720 = vadd.f32 %v2697, %v2714
        %v2721 = vadd.f32 %v2698, %v2714
        %v2722 = vadd.f32 %v2699, %v2714
        %v2723 = vadd.f32 %v2700, %v2714
        %v2724 = vadd.f32 %v2701, %v2714
        %v2725 = vadd.f32 %v2702, %v2714
        %v2726 = vadd.f32 %v2703, %v2714
        %v2727 = vadd.f32 %v2704, %v2714
        %v2728 = vadd.f32 %v2705, %v2714
        %v2729 = vadd.f32 %v2706, %v2714
        %v2730 = vadd.f32 %v2707, %v2714
        %v2731 = vadd.f32 %v2708, %v2714
        %v2732 = vmax.f32 %v2716, 0.0
        %v2733 = vmax.f32 %v2717, 0.0
        %v2734 = vmax.f32 %v2718, 0.0
        %v2735 = vmax.f32 %v2719, 0.0
        %v2736 = vmax.f32 %v2720, 0.0
        %v2737 = vmax.f32 %v2721, 0.0
        %v2738 = vmax.f32 %v2722, 0.0
        %v2739 = vmax.f32 %v2723, 0.0
        %v2740 = vmax.f32 %v2724, 0.0
        %v2741 = vmax.f32 %v2725, 0.0
        %v2742 = vmax.f32 %v2726, 0.0
        %v2743 = vmax.f32 %v2727, 0.0
        %v2744 = vmax.f32 %v2728, 0.0
        %v2745 = vmax.f32 %v2729, 0.0
        %v2746 = vmax.f32 %v2730, 0.0
        %v2747 = vmax.f32 %v2731, 0.0
        %v2748 = vld [vmem:[#allocation2] sm:$0x1]
        %v2749 = vadd.f32 %v2732, %v2733
        %v2750 = vadd.f32 %v2749, %v2734
        %v2751 = vadd.f32 %v2750, %v2735
        %v2752 = vadd.f32 %v2751, %v2736
        %v2753 = vadd.f32 %v2752, %v2737
        %v2754 = vadd.f32 %v2753, %v2738
        %v2755 = vadd.f32 %v2754, %v2739
        %v2756 = vadd.f32 %v2755, %v2740
        %v2757 = vadd.f32 %v2756, %v2741
        %v2758 = vadd.f32 %v2757, %v2742
        %v2759 = vadd.f32 %v2758, %v2743
        %v2760 = vadd.f32 %v2759, %v2744
        %v2761 = vadd.f32 %v2760, %v2745
        %v2762 = vadd.f32 %v2761, %v2746
        %v2763 = vadd.f32 %v2762, %v2747
        %v2764 = vrot.slane %v2763, 4
        %v2765 = vadd.f32 %v2763, %v2764
        %v2766 = vrot.slane %v2765, 2
        %v2767 = vadd.f32 %v2765, %v2766
        %v2768 = vrot.slane %v2767, 1
        %v2769 = vadd.f32 %v2767, %v2768
        %v2770 = vadd.f32 %v2748, %v2769
        %2771 = vst [vmem:[#allocation2] sm:$0x1] %v2770
        %p2772 = scmp.eq.s32.totalorder %s24, 1
        // Predicated region
        $region45: #{tpu_custom_call.1} parent=39 // pred_check
          %p2773 = pneg %p2772
        $region46: #{tpu_custom_call.1} parent=39 // pred_check_branch
          %2775 = sbr.rel (%p2773) target = $region48
        $region47: #{tpu_custom_call.1} parent=39 // pred_region
          %v2776 = vld [vmem:[#allocation2] sm:$0x1]
          %v2777 = vmul.f32 %v2776, 0.00390625
          %v2778 = vld [vmem:[%s3] sm:$0xff]
          %v2779 = vld [vmem:[%s3 + $0x8] sm:$0xff]
          %v2780 = vld [vmem:[%s3 + $0x10] sm:$0xff]
          %v2781 = vld [vmem:[%s3 + $0x18] sm:$0xff]
          %v2782 = vld [vmem:[%s3 + $0x20] sm:$0xff]
          %v2783 = vld [vmem:[%s3 + $0x28] sm:$0xff]
          %v2784 = vld [vmem:[%s3 + $0x30] sm:$0xff]
          %v2785 = vld [vmem:[%s3 + $0x38] sm:$0xff]
          %v2786 = vld [vmem:[%s3 + $0x40] sm:$0xff]
          %v2787 = vld [vmem:[%s3 + $0x48] sm:$0xff]
          %v2788 = vld [vmem:[%s3 + $0x50] sm:$0xff]
          %v2789 = vld [vmem:[%s3 + $0x58] sm:$0xff]
          %v2790 = vld [vmem:[%s3 + $0x60] sm:$0xff]
          %v2791 = vld [vmem:[%s3 + $0x68] sm:$0xff]
          %v2792 = vld [vmem:[%s3 + $0x70] sm:$0xff]
          %v2793 = vld [vmem:[%s3 + $0x78] sm:$0xff]
          %v2794 = vld [vmem:[%s4] sm:$0x1]
          %2795 = vmatprep.subr.mxu0 0.0
          %2796 = vmatpush1.msra.mxu0 %v2778
          %2797 = vmatprep.subr.mxu0 0.0
          %2798 = vmatpush1.msra.mxu0 %v2779
          %2799 = vmatprep.subr.mxu0 0.0
          %2800 = vmatpush1.msra.mxu0 %v2780
          %2801 = vmatprep.subr.mxu0 0.0
          %2802 = vmatpush1.msra.mxu0 %v2781
          %2803 = vmatprep.subr.mxu0 0.0
          %2804 = vmatpush1.msra.mxu0 %v2782
          %2805 = vmatprep.subr.mxu0 0.0
          %2806 = vmatpush1.msra.mxu0 %v2783
          %2807 = vmatprep.subr.mxu0 0.0
          %2808 = vmatpush1.msra.mxu0 %v2784
          %2809 = vmatprep.subr.mxu0 0.0
          %2810 = vmatpush1.msra.mxu0 %v2785
          %2811 = vmatprep.subr.mxu0 0.0
          %2812 = vmatpush1.msra.mxu0 %v2786
          %2813 = vmatprep.subr.mxu0 0.0
          %2814 = vmatpush1.msra.mxu0 %v2787
          %2815 = vmatprep.subr.mxu0 0.0
          %2816 = vmatpush1.msra.mxu0 %v2788
          %2817 = vmatprep.subr.mxu0 0.0
          %2818 = vmatpush1.msra.mxu0 %v2789
          %2819 = vmatprep.subr.mxu0 0.0
          %2820 = vmatpush1.msra.mxu0 %v2790
          %2821 = vmatprep.subr.mxu0 0.0
          %2822 = vmatpush1.msra.mxu0 %v2791
          %2823 = vmatprep.subr.mxu0 0.0
          %2824 = vmatpush1.msra.mxu0 %v2792
          %2825 = vmatprep.subr.mxu0 0.0
          %2826 = vmatpush1.msra.mxu0 %v2793
          %2827 = vmatprep.subr.mxu0 0.0
          %2828 = vmatpush1.msra.mxu0 0.0
          %2829 = vmatprep.subr.mxu0 0.0
          %2830 = vmatpush1.msra.mxu0 0.0
          %2831 = vmatprep.subr.mxu0 0.0
          %2832 = vmatpush1.msra.mxu0 0.0
          %2833 = vmatprep.subr.mxu0 0.0
          %2834 = vmatpush1.msra.mxu0 0.0
          %2835 = vmatprep.subr.mxu0 0.0
          %2836 = vmatpush1.msra.mxu0 0.0
          %2837 = vmatprep.subr.mxu0 0.0
          %2838 = vmatpush1.msra.mxu0 0.0
          %2839 = vmatprep.subr.mxu0 0.0
          %2840 = vmatpush1.msra.mxu0 0.0
          %2841 = vmatprep.subr.mxu0 0.0
          %2842 = vmatpush1.msra.mxu0 0.0
          %2843 = vmatprep.subr.mxu0 0.0
          %2844 = vmatpush1.msra.mxu0 0.0
          %2845 = vmatprep.subr.mxu0 0.0
          %2846 = vmatpush1.msra.mxu0 0.0
          %2847 = vmatprep.subr.mxu0 0.0
          %2848 = vmatpush1.msra.mxu0 0.0
          %2849 = vmatprep.subr.mxu0 0.0
          %2850 = vmatpush1.msra.mxu0 0.0
          %2851 = vmatprep.subr.mxu0 0.0
          %2852 = vmatpush1.msra.mxu0 0.0
          %2853 = vmatprep.subr.mxu0 0.0
          %2854 = vmatpush1.msra.mxu0 0.0
          %2855 = vmatprep.subr.mxu0 0.0
          %2856 = vmatpush1.msra.mxu0 0.0
          %2857 = vmatprep.subr.mxu0 0.0
          %2858 = vmatpush1.msra.mxu0 0.0
          %2859 = vmatprep.mubr.f32.mxu0 0.0
          %2860 = vmatmul.mubr.f32.gmra.mrb[0].mxu0 %v2777
          %v2861 = vpop.f32.mrb[0].mxu0
          %v2862 = vadd.f32 %v2794, %v2861
          %v2863 = vpop.f32.mrb[0].mxu0
          %2864 = vdwg.mxu0
          %2865 = vst [vmem:[%s238] sm:$0x1] %v2862
        $region48: #{tpu_custom_call.1} parent=39 // pred_fallthru
          _
        %s2866 = sand.u32 %s151, 1
        %s2867 = scalar_lea.sflag [#allocation4], %s2866
        %s2868 = sand.u32 %s151, 1
        %s2869 = scalar_lea.vmem [#allocation3], %s2868
        // Predicated region
        $region49: #{tpu_custom_call.1} parent=39 // pred_check
          %p2870 = pneg %p161
        $region50: #{tpu_custom_call.1} parent=39 // pred_check_branch
          %2872 = sbr.rel (%p2870) target = $region52
        $region51: #{tpu_custom_call.1} parent=39 // pred_region
          %s2874 = ssub.s32 16, 16
          %2875 = vsyncadd %s2867, %s2874
          %s2876 = smul.addr %s23, 16
          %s2877 = scalar_lea.hbm %s5, %s2876
          %s2879 = sshll.u32 %s2869, 4
          %s2880 = int_to_ptr.vmem [resolvable:$true] %s2879
          %2882 = dma.vmem_to_hbm [thread:$0]  %s2880, 16, %s2877, %s2867
        $region52: #{tpu_custom_call.1} parent=39 // pred_fallthru
          _
      $region40: #{tpu_custom_call.1} parent=5 // pred_fallthru
        _
      %p2883 = scmp.le.s32.totalorder 2, %s14
      // Predicated region
      $region53: #{tpu_custom_call.1} parent=5 // pred_check
        %p2884 = pneg %p2883
      $region54: #{tpu_custom_call.1} parent=5 // pred_check_branch
        %2886 = sbr.rel (%p2884) target = $region56
      $region55: #{tpu_custom_call.1} parent=5 // pred_region
        %s2887 = ssub.s32 %s14, 2
        // Predicated region
        $region57: #{tpu_custom_call.1} parent=55 // pred_check
          %p2888 = pneg %p167
        $region58: #{tpu_custom_call.1} parent=55 // pred_check_branch
          %2890 = sbr.rel (%p2888) target = $region60
        $region59: #{tpu_custom_call.1} parent=55 // pred_region
          %s2891 = sand.u32 %s152, 1
          %s2892 = scalar_lea.sflag [#allocation4], %s2891
          %s2893 = sand.u32 %s152, 1
          %s2894 = scalar_lea.vmem [#allocation3], %s2893
          %2895 = dma.done %s2892, 16
        $region60: #{tpu_custom_call.1} parent=55 // pred_fallthru
          _
      $region56: #{tpu_custom_call.1} parent=5 // pred_fallthru
        _
    $region6: #{tpu_custom_call.1} parent=1 // loop_footer
      %s18 = sadd.s32 1, %s14
    $region7: #{tpu_custom_call.1} parent=1 // loop_footer_branch
      %13 = sbr.rel target = $region3
    $region8: #{tpu_custom_call.1} parent=1 // loop_exit
      _
    %2896 = vsyncpa [#allocation4], 1
    %s2897 = scalar_lea.sflag [#allocation4], 1
    %2898 = vsyncpa %s2897, 1

</llo_original>
